<compile_context>
chip_gen: v7x
topology: tpu7x:2x2x1
jax: 0.10.0
libtpu: 0.0.40
codegen_flags: <defaults>
</compile_context>

<pallas_src>
import functools
import numpy as np

import jax
import jax.numpy as jnp
from jax.experimental import pallas as pl
from jax.experimental.pallas import tpu as pltpu

EPS = 1e-5  # PyTorch BatchNorm1d default eps


def _elu(h):
    # alpha = 1.0, matches F.elu default.
    return jnp.where(h > 0, h, jnp.exp(jnp.minimum(h, 0.0)) - 1.0)


def _bn_train(h, gamma, beta):
    # Training-mode BatchNorm1d over the node axis (biased variance).
    mean = jnp.mean(h, axis=0, keepdims=True)
    var = jnp.mean((h - mean) ** 2, axis=0, keepdims=True)
    return (h - mean) * jax.lax.rsqrt(var + EPS) * gamma + beta


# --------------------------------------------------------------------------
# Fully fused ResBlock kernel — sparse edge path, everything stays in VMEM/SMEM.
# --------------------------------------------------------------------------
def resblock_kernel(src_ref, dst_ref,                       # SMEM int32 [E] (prefetch)
                    x_ref, w1_ref, g1_ref, beta1_ref,
                    wcat_ref, c_ref, rep_ref, hsum_ref, invdeg_ref,
                    g2_ref, beta2_ref, w2_ref, b2_ref,
                    o_ref,
                    xu_tab, xw_tab, qlog_buf, ew_buf, acc_ref,
                    *, heads, out_ch):
    f32 = jnp.float32
    HW = heads * out_ch                       # lane-dense message width (128)
    E = src_ref.shape[0]

    # ---- stage 1: x1 = ELU(BN1(x @ W1))  (fc1 bias absorbed by BN1) --------
    x1 = _elu(_bn_train(
        jnp.dot(x_ref[...], w1_ref[...], preferred_element_type=f32),
        g1_ref[...], beta1_ref[...]))

    # ---- node-level FeaStConv transforms, ONE fused matmul: [w_conv | u] ----
    xuw = jnp.dot(x1, wcat_ref[...], preferred_element_type=f32)   # [N, HW+heads]
    xw_tab[...] = xuw[:, :HW]                 # [N, HW]   (x1 @ w_conv)
    xu_tab[...] = xuw[:, HW:]                 # [N, heads] (x1 @ u)

    # ---- sparse edge gather: per-edge dynamic row copies from node tables ---
    def gather(e, carry):
        s = src_ref[e]
        d = dst_ref[e]
        ew_buf[pl.ds(e, 1), :] = xw_tab[pl.ds(s, 1), :]                       # xw[src]
        qlog_buf[pl.ds(e, 1), :] = xu_tab[pl.ds(d, 1), :] - xu_tab[pl.ds(s, 1), :]
        return carry
    jax.lax.fori_loop(0, E, gather, 0)

    # ---- per-edge attention over heads (vectorized over the edge axis) ------
    q = qlog_buf[...] + c_ref[...]                                  # [E, heads]
    q = jnp.exp(q - jnp.max(q, axis=-1, keepdims=True))
    # approx reciprocal (EUP slot); rows sum to 1 within ~1e-3 (tolerance 5e-2)
    q = q * pl.reciprocal(jnp.sum(q, axis=-1, keepdims=True), approx=True)

    # expand head weights to full lane width with a tiny host-constant matmul
    q_wide = jnp.dot(q, rep_ref[...], preferred_element_type=f32)   # [E, HW]
    ew_buf[...] = ew_buf[...] * q_wide                              # slab, in place

    # ---- scatter-sum over destination nodes (lane-dense 128-wide rows) ------
    acc_ref[...] = jnp.zeros_like(acc_ref)

    def scatter(e, carry):
        d = dst_ref[e]
        acc_ref[pl.ds(d, 1), :] = acc_ref[pl.ds(d, 1), :] + ew_buf[pl.ds(e, 1), :]
        return carry
    jax.lax.fori_loop(0, E, scatter, 0)

    # head-sum as one node-level MXU matmul, then exact mean (conv bias -> BN2)
    aggr = jnp.dot(acc_ref[...], hsum_ref[...],
                   preferred_element_type=f32) * invdeg_ref[...]    # [N, out_ch]

    # ---- stage 2: out = fc2( ELU(BN2(aggr)) ) -------------------------------
    x2 = _elu(_bn_train(aggr, g2_ref[...], beta2_ref[...]))
    o_ref[...] = jnp.dot(x2, w2_ref[...], preferred_element_type=f32) + b2_ref[...]
    # TODO(synk): [N, 32] output is a masked partial store; pad/fuse downstream
    #   for lane-dense stores on v5e once N is large.


def res_block_forward(x, edge_src, edge_dst, p, *, heads, in_channels):
    N, channels = x.shape
    E = int(edge_src.shape[0])
    HW = heads * in_channels

    src = edge_src.astype(jnp.int32)
    dst = edge_dst.astype(jnp.int32)

    # Host-side constants (feedback: no in-kernel iota/compare for these).
    k = np.arange(HW)
    rep = jnp.asarray((k[None, :] // in_channels
                       == np.arange(heads)[:, None]).astype(np.float32))       # [heads, HW]
    hsum = jnp.asarray((k[:, None] % in_channels
                        == np.arange(in_channels)[None, :]).astype(np.float32))  # [HW, out]

    # Exact per-node in-degree (CSR-style host glue; self-loops guarantee >= 1).
    deg = jax.ops.segment_sum(jnp.ones((E,), jnp.float32), dst, num_segments=N)
    inv_deg = (1.0 / deg).reshape(N, 1)

    # Fused FeaStConv weights: [w_conv | u]  ->  one matmul per node.
    wcat = jnp.concatenate([p["w_conv"], p["u"]], axis=1)           # [in_ch, HW+heads]

    kernel = functools.partial(resblock_kernel, heads=heads, out_ch=in_channels)

    def full(shape):
        nd = len(shape)
        return pl.BlockSpec(shape, lambda *_: (0,) * nd)            # ignores prefetch refs

    grid_spec = pltpu.PrefetchScalarGridSpec(
        num_scalar_prefetch=2,                 # src, dst edge ids live in SMEM
        grid=(1,),
        in_specs=[
            full(x.shape),
            full(p["w1"].shape), full(p["g1"].shape), full(p["beta1"].shape),
            full(wcat.shape), full(p["c"].shape), full(rep.shape), full(hsum.shape),
            full(inv_deg.shape),
            full(p["g2"].shape), full(p["beta2"].shape),
            full(p["w2"].shape), full(p["b2"].shape),
        ],
        out_specs=full((N, channels)),
        scratch_shapes=[
            pltpu.VMEM((N, heads), jnp.float32),   # xu_tab  (x1 @ u)
            pltpu.VMEM((N, HW), jnp.float32),      # xw_tab  (x1 @ w_conv)
            pltpu.VMEM((E, heads), jnp.float32),   # qlog_buf (gathered logits)
            pltpu.VMEM((E, HW), jnp.float32),      # ew_buf  (xw[src] -> slab, in place)
            pltpu.VMEM((N, HW), jnp.float32),      # acc     (lane-dense scatter sum)
        ],
    )

    return pl.pallas_call(
        kernel,
        out_shape=jax.ShapeDtypeStruct((N, channels), jnp.float32),
        grid_spec=grid_spec,
        compiler_params=pltpu.CompilerParams(
            dimension_semantics=("arbitrary",),
            vmem_limit_bytes=48 * 1024 * 1024),
    )(src, dst, x,
      p["w1"], p["g1"], p["beta1"],
      wcat, p["c"], rep, hsum, inv_deg,
      p["g2"], p["beta2"], p["w2"], p["b2"])


# --------------------------------------------------------------------------
# Pure-JAX reference (for sanity check) — keeps the biases explicitly.
# --------------------------------------------------------------------------
def res_block_reference(x, edge_src, edge_dst, p, *, heads, in_channels):
    N = x.shape[0]

    def bn(h, g, beta):
        m = h.mean(0, keepdims=True)
        v = ((h - m) ** 2).mean(0, keepdims=True)
        return (h - m) / jnp.sqrt(v + EPS) * g + beta

    h = x @ p["w1"] + p["b1"]
    h = _elu(bn(h, p["g1"], p["beta1"]))
    xi, xj = h[edge_dst], h[edge_src]
    q = jax.nn.softmax((xi - xj) @ p["u"] + p["c"], axis=1)
    xw = (xj @ p["w_conv"]).reshape(-1, heads, in_channels)
    msg = (xw * q[:, :, None]).sum(1)
    agg = jax.ops.segment_sum(msg, edge_dst, num_segments=N)
    deg = jax.ops.segment_sum(jnp.ones((msg.shape[0],), jnp.float32), edge_dst,
                              num_segments=N)
    a = agg / deg[:, None] + p["b_conv"]
    a = _elu(bn(a, p["g2"], p["beta2"]))
    return a @ p["w2"] + p["b2"]


if __name__ == "__main__":
    # Small, deterministic setup
    N = 64            # number of graph nodes
    channels = 32     # ResBlock "channels" (fc1 in / fc2 out)
    in_channels = 16  # ResBlock "in_channels" (hidden / conv width)
    heads = 8
    E0 = 100          # raw random edges before self-loop processing

    key = jax.random.PRNGKey(0)
    ks = jax.random.split(key, 16)

    x = jax.random.normal(ks[0], (N, channels), dtype=jnp.float32)
    edge_index = jax.random.randint(ks[1], (2, E0), 0, N, dtype=jnp.int32)

    # edge preprocessing (remove_self_loops + add_self_loops), host-side glue
    ei = np.asarray(edge_index)
    mask = ei[0] != ei[1]
    ei = ei[:, mask]
    loops = np.arange(N, dtype=np.int32)
    edge_src = jnp.asarray(np.concatenate([ei[0], loops]).astype(np.int32))
    edge_dst = jnp.asarray(np.concatenate([ei[1], loops]).astype(np.int32))

    # Deterministic parameter init (std=0.1 normals, mirroring reset_parameters)
    s = 0.1
    params = {
        # fc1: Linear(channels -> in_channels)  (stored transposed for x @ W)
        "w1": s * jax.random.normal(ks[2], (channels, in_channels), jnp.float32),
        "b1": s * jax.random.normal(ks[3], (1, in_channels), jnp.float32),
        # bn1
        "g1": 1.0 + s * jax.random.normal(ks[4], (1, in_channels), jnp.float32),
        "beta1": s * jax.random.normal(ks[5], (1, in_channels), jnp.float32),
        # FeaStConv(in_channels -> in_channels, heads)
        "w_conv": s * jax.random.normal(ks[6], (in_channels, heads * in_channels), jnp.float32),
        "u": s * jax.random.normal(ks[7], (in_channels, heads), jnp.float32),
        "c": s * jax.random.normal(ks[8], (1, heads), jnp.float32),
        "b_conv": s * jax.random.normal(ks[9], (1, in_channels), jnp.float32),
        # bn2
        "g2": 1.0 + s * jax.random.normal(ks[10], (1, in_channels), jnp.float32),
        "beta2": s * jax.random.normal(ks[11], (1, in_channels), jnp.float32),
        # fc2: Linear(in_channels -> channels)
        "w2": s * jax.random.normal(ks[12], (in_channels, channels), jnp.float32),
        "b2": s * jax.random.normal(ks[13], (1, channels), jnp.float32),
    }

    out = res_block_forward(x, edge_src, edge_dst, params,
                            heads=heads, in_channels=in_channels)
    out = jax.block_until_ready(out)

    ref = res_block_reference(x, edge_src, edge_dst, params,
                              heads=heads, in_channels=in_channels)
    ref = jax.block_until_ready(ref)

    assert out.shape == (N, channels), out.shape
    assert bool(jnp.all(jnp.isfinite(out)))
    np.testing.assert_allclose(np.asarray(out), np.asarray(ref), rtol=5e-2, atol=5e-2)

    print("KERNEL_OK")
</pallas_src>

<mosaic_0001>
module attributes {stable_mosaic.version = 11 : i64} {
  func.func @resblock_kernel(%arg0: i32, %arg1: memref<162xi32, #tpu.memory_space<smem>>, %arg2: memref<162xi32, #tpu.memory_space<smem>>, %arg3: memref<64x32xf32, #tpu.memory_space<vmem>>, %arg4: memref<32x16xf32, #tpu.memory_space<vmem>>, %arg5: memref<1x16xf32, #tpu.memory_space<vmem>>, %arg6: memref<1x16xf32, #tpu.memory_space<vmem>>, %arg7: memref<16x136xf32, #tpu.memory_space<vmem>>, %arg8: memref<1x8xf32, #tpu.memory_space<vmem>>, %arg9: memref<8x128xf32, #tpu.memory_space<vmem>>, %arg10: memref<128x16xf32, #tpu.memory_space<vmem>>, %arg11: memref<64x1xf32, #tpu.memory_space<vmem>>, %arg12: memref<1x16xf32, #tpu.memory_space<vmem>>, %arg13: memref<1x16xf32, #tpu.memory_space<vmem>>, %arg14: memref<16x32xf32, #tpu.memory_space<vmem>>, %arg15: memref<1x32xf32, #tpu.memory_space<vmem>>, %arg16: memref<64x32xf32, #tpu.memory_space<vmem>>, %arg17: memref<64x8xf32, #tpu.memory_space<vmem>>, %arg18: memref<64x128xf32, #tpu.memory_space<vmem>>, %arg19: memref<162x8xf32, #tpu.memory_space<vmem>>, %arg20: memref<162x128xf32, #tpu.memory_space<vmem>>, %arg21: memref<64x128xf32, #tpu.memory_space<vmem>>) attributes {dimension_semantics = [#tpu.dimension_semantics<arbitrary>], iteration_bounds = array<i64: 1>, scalar_prefetch = 2 : i64, scratch_operands = 5 : i64, tpu.core_type = #tpu.core_type<tc>, window_params = [{pipeline_mode = #tpu.pipeline_mode<synchronous>, transform_indices = @transform_0, window_bounds = array<i64: 64, 32>}, {pipeline_mode = #tpu.pipeline_mode<synchronous>, transform_indices = @transform_1, window_bounds = array<i64: 32, 16>}, {pipeline_mode = #tpu.pipeline_mode<synchronous>, transform_indices = @transform_2, window_bounds = array<i64: 1, 16>}, {pipeline_mode = #tpu.pipeline_mode<synchronous>, transform_indices = @transform_3, window_bounds = array<i64: 1, 16>}, {pipeline_mode = #tpu.pipeline_mode<synchronous>, transform_indices = @transform_4, window_bounds = array<i64: 16, 136>}, {pipeline_mode = #tpu.pipeline_mode<synchronous>, transform_indices = @transform_5, window_bounds = array<i64: 1, 8>}, {pipeline_mode = #tpu.pipeline_mode<synchronous>, transform_indices = @transform_6, window_bounds = array<i64: 8, 128>}, {pipeline_mode = #tpu.pipeline_mode<synchronous>, transform_indices = @transform_7, window_bounds = array<i64: 128, 16>}, {pipeline_mode = #tpu.pipeline_mode<synchronous>, transform_indices = @transform_8, window_bounds = array<i64: 64, 1>}, {pipeline_mode = #tpu.pipeline_mode<synchronous>, transform_indices = @transform_9, window_bounds = array<i64: 1, 16>}, {pipeline_mode = #tpu.pipeline_mode<synchronous>, transform_indices = @transform_10, window_bounds = array<i64: 1, 16>}, {pipeline_mode = #tpu.pipeline_mode<synchronous>, transform_indices = @transform_11, window_bounds = array<i64: 16, 32>}, {pipeline_mode = #tpu.pipeline_mode<synchronous>, transform_indices = @transform_12, window_bounds = array<i64: 1, 32>}, {pipeline_mode = #tpu.pipeline_mode<synchronous>, transform_indices = @transform_13, window_bounds = array<i64: 64, 32>}]} {
    %c0 = arith.constant 0 : index
    %c0_0 = arith.constant 0 : index
    %0 = vector.load %arg3[%c0, %c0_0] : memref<64x32xf32, #tpu.memory_space<vmem>>, vector<64x32xf32>
    %c0_1 = arith.constant 0 : index
    %c0_2 = arith.constant 0 : index
    %1 = vector.load %arg4[%c0_1, %c0_2] : memref<32x16xf32, #tpu.memory_space<vmem>>, vector<32x16xf32>
    %cst = arith.constant dense<0.000000e+00> : vector<64x16xf32>
    %2 = tpu.matmul %0, %1, %cst {dimension_numbers = #tpu.dot_dimension_numbers<[1], [0], [0], [1], [0, 0, 1, 1], [], []>} : vector<64x32xf32>, vector<32x16xf32>, vector<64x16xf32> -> vector<64x16xf32>
    %c0_3 = arith.constant 0 : index
    %c0_4 = arith.constant 0 : index
    %3 = vector.load %arg5[%c0_3, %c0_4] : memref<1x16xf32, #tpu.memory_space<vmem>>, vector<1x16xf32>
    %c0_5 = arith.constant 0 : index
    %c0_6 = arith.constant 0 : index
    %4 = vector.load %arg6[%c0_5, %c0_6] : memref<1x16xf32, #tpu.memory_space<vmem>>, vector<1x16xf32>
    %cst_7 = arith.constant dense<0.000000e+00> : vector<16xf32>
    %5 = vector.multi_reduction <add>, %2, %cst_7 [0] : vector<64x16xf32> to vector<16xf32>
    %6 = vector.shape_cast %5 : vector<16xf32> to vector<1x16xf32>
    %cst_8 = arith.constant 6.400000e+01 : f32
    %7 = vector.broadcast %cst_8 : f32 to vector<1x16xf32>
    %8 = arith.divf %6, %7 : vector<1x16xf32>
    %9 = vector.broadcast %8 : vector<1x16xf32> to vector<64x16xf32>
    %10 = arith.subf %2, %9 : vector<64x16xf32>
    %11 = arith.mulf %10, %10 : vector<64x16xf32>
    %cst_9 = arith.constant dense<0.000000e+00> : vector<16xf32>
    %12 = vector.multi_reduction <add>, %11, %cst_9 [0] : vector<64x16xf32> to vector<16xf32>
    %13 = vector.shape_cast %12 : vector<16xf32> to vector<1x16xf32>
    %cst_10 = arith.constant 6.400000e+01 : f32
    %14 = vector.broadcast %cst_10 : f32 to vector<1x16xf32>
    %15 = arith.divf %13, %14 : vector<1x16xf32>
    %16 = vector.broadcast %8 : vector<1x16xf32> to vector<64x16xf32>
    %17 = arith.subf %2, %16 : vector<64x16xf32>
    %cst_11 = arith.constant 9.99999974E-6 : f32
    %18 = vector.broadcast %cst_11 : f32 to vector<1x16xf32>
    %19 = arith.addf %15, %18 : vector<1x16xf32>
    %20 = math.rsqrt %19 : vector<1x16xf32>
    %21 = vector.broadcast %20 : vector<1x16xf32> to vector<64x16xf32>
    %22 = arith.mulf %17, %21 : vector<64x16xf32>
    %23 = vector.broadcast %3 : vector<1x16xf32> to vector<64x16xf32>
    %24 = arith.mulf %22, %23 : vector<64x16xf32>
    %25 = vector.broadcast %4 : vector<1x16xf32> to vector<64x16xf32>
    %26 = arith.addf %24, %25 : vector<64x16xf32>
    %cst_12 = arith.constant 0.000000e+00 : f32
    %27 = vector.broadcast %cst_12 : f32 to vector<64x16xf32>
    %28 = arith.cmpf ogt, %26, %27 : vector<64x16xf32>
    %cst_13 = arith.constant 0.000000e+00 : f32
    %29 = vector.broadcast %cst_13 : f32 to vector<64x16xf32>
    %30 = arith.minimumf %26, %29 : vector<64x16xf32>
    %31 = math.exp %30 : vector<64x16xf32>
    %cst_14 = arith.constant 1.000000e+00 : f32
    %32 = vector.broadcast %cst_14 : f32 to vector<64x16xf32>
    %33 = arith.subf %31, %32 : vector<64x16xf32>
    %34 = arith.select %28, %26, %33 : vector<64x16xi1>, vector<64x16xf32>
    %c0_15 = arith.constant 0 : index
    %c0_16 = arith.constant 0 : index
    %35 = vector.load %arg7[%c0_15, %c0_16] : memref<16x136xf32, #tpu.memory_space<vmem>>, vector<16x136xf32>
    %cst_17 = arith.constant dense<0.000000e+00> : vector<64x136xf32>
    %36 = tpu.matmul %34, %35, %cst_17 {dimension_numbers = #tpu.dot_dimension_numbers<[1], [0], [0], [1], [0, 0, 1, 1], [], []>} : vector<64x16xf32>, vector<16x136xf32>, vector<64x136xf32> -> vector<64x136xf32>
    %37 = vector.extract_strided_slice %36 {offsets = [0, 0], sizes = [64, 128], strides = [1, 1]} : vector<64x136xf32> to vector<64x128xf32>
    %c0_18 = arith.constant 0 : index
    %c0_19 = arith.constant 0 : index
    %38 = vector.load %arg18[%c0_18, %c0_19] : memref<64x128xf32, #tpu.memory_space<vmem>>, vector<64x128xf32>
    tpu.vector_store %arg18[%c0_18, %c0_19], %37 {strides = array<i32>} : memref<64x128xf32, #tpu.memory_space<vmem>>, vector<64x128xf32>,
    %39 = vector.extract_strided_slice %36 {offsets = [0, 128], sizes = [64, 8], strides = [1, 1]} : vector<64x136xf32> to vector<64x8xf32>
    %c0_20 = arith.constant 0 : index
    %c0_21 = arith.constant 0 : index
    %40 = vector.load %arg17[%c0_20, %c0_21] : memref<64x8xf32, #tpu.memory_space<vmem>>, vector<64x8xf32>
    tpu.vector_store %arg17[%c0_20, %c0_21], %39 {strides = array<i32>} : memref<64x8xf32, #tpu.memory_space<vmem>>, vector<64x8xf32>,
    %c0_i32 = arith.constant 0 : i32
    %c162_i32 = arith.constant 162 : i32
    %41 = arith.addi %c0_i32, %c162_i32 : i32
    %c1_i32 = arith.constant 1 : i32
    scf.for %arg22 = %c0_i32 to %41 step %c1_i32  : i32 {
      %108 = arith.index_cast %arg22 : i32 to index
      %109 = memref.load %arg1[%108] : memref<162xi32, #tpu.memory_space<smem>>
      %110 = arith.index_cast %arg22 : i32 to index
      %111 = memref.load %arg2[%110] : memref<162xi32, #tpu.memory_space<smem>>
      %112 = arith.index_cast %109 : i32 to index
      %c0_69 = arith.constant 0 : index
      %113 = vector.load %arg18[%112, %c0_69] : memref<64x128xf32, #tpu.memory_space<vmem>>, vector<1x128xf32>
      %114 = arith.index_cast %arg22 : i32 to index
      %c0_70 = arith.constant 0 : index
      %115 = vector.load %arg20[%114, %c0_70] : memref<162x128xf32, #tpu.memory_space<vmem>>, vector<1x128xf32>
      tpu.vector_store %arg20[%114, %c0_70], %113 {strides = array<i32>} : memref<162x128xf32, #tpu.memory_space<vmem>>, vector<1x128xf32>,
      %116 = arith.index_cast %111 : i32 to index
      %c0_71 = arith.constant 0 : index
      %117 = vector.load %arg17[%116, %c0_71] : memref<64x8xf32, #tpu.memory_space<vmem>>, vector<1x8xf32>
      %118 = arith.index_cast %109 : i32 to index
      %c0_72 = arith.constant 0 : index
      %119 = vector.load %arg17[%118, %c0_72] : memref<64x8xf32, #tpu.memory_space<vmem>>, vector<1x8xf32>
      %120 = arith.subf %117, %119 : vector<1x8xf32>
      %121 = arith.index_cast %arg22 : i32 to index
      %c0_73 = arith.constant 0 : index
      %122 = vector.load %arg19[%121, %c0_73] : memref<162x8xf32, #tpu.memory_space<vmem>>, vector<1x8xf32>
      tpu.vector_store %arg19[%121, %c0_73], %120 {strides = array<i32>} : memref<162x8xf32, #tpu.memory_space<vmem>>, vector<1x8xf32>,
    }
    %c162_i32_22 = arith.constant 162 : i32
    %c0_23 = arith.constant 0 : index
    %c0_24 = arith.constant 0 : index
    %42 = vector.load %arg19[%c0_23, %c0_24] : memref<162x8xf32, #tpu.memory_space<vmem>>, vector<162x8xf32>
    %c0_25 = arith.constant 0 : index
    %c0_26 = arith.constant 0 : index
    %43 = vector.load %arg8[%c0_25, %c0_26] : memref<1x8xf32, #tpu.memory_space<vmem>>, vector<1x8xf32>
    %44 = vector.broadcast %43 : vector<1x8xf32> to vector<162x8xf32>
    %45 = arith.addf %42, %44 : vector<162x8xf32>
    %cst_27 = arith.constant dense<0xFF800000> : vector<162xf32>
    %46 = vector.multi_reduction <maximumf>, %45, %cst_27 [1] : vector<162x8xf32> to vector<162xf32>
    %47 = vector.shape_cast %46 : vector<162xf32> to vector<162x1xf32>
    %48 = vector.broadcast %47 : vector<162x1xf32> to vector<162x8xf32>
    %49 = arith.subf %45, %48 : vector<162x8xf32>
    %50 = math.exp %49 : vector<162x8xf32>
    %cst_28 = arith.constant dense<0.000000e+00> : vector<162xf32>
    %51 = vector.multi_reduction <add>, %50, %cst_28 [1] : vector<162x8xf32> to vector<162xf32>
    %52 = vector.shape_cast %51 : vector<162xf32> to vector<162x1xf32>
    %53 = tpu.reciprocal %52 {approx = true} : vector<162x1xf32> -> vector<162x1xf32>
    %54 = vector.broadcast %53 : vector<162x1xf32> to vector<162x8xf32>
    %55 = arith.mulf %50, %54 : vector<162x8xf32>
    %c0_29 = arith.constant 0 : index
    %c0_30 = arith.constant 0 : index
    %56 = vector.load %arg9[%c0_29, %c0_30] : memref<8x128xf32, #tpu.memory_space<vmem>>, vector<8x128xf32>
    %cst_31 = arith.constant dense<0.000000e+00> : vector<162x128xf32>
    %57 = tpu.matmul %55, %56, %cst_31 {dimension_numbers = #tpu.dot_dimension_numbers<[1], [0], [0], [1], [0, 0, 1, 1], [], []>} : vector<162x8xf32>, vector<8x128xf32>, vector<162x128xf32> -> vector<162x128xf32>
    %c0_32 = arith.constant 0 : index
    %c0_33 = arith.constant 0 : index
    %58 = vector.load %arg20[%c0_32, %c0_33] : memref<162x128xf32, #tpu.memory_space<vmem>>, vector<162x128xf32>
    %59 = arith.mulf %58, %57 : vector<162x128xf32>
    %c0_34 = arith.constant 0 : index
    %c0_35 = arith.constant 0 : index
    %60 = vector.load %arg20[%c0_34, %c0_35] : memref<162x128xf32, #tpu.memory_space<vmem>>, vector<162x128xf32>
    tpu.vector_store %arg20[%c0_34, %c0_35], %59 {strides = array<i32>} : memref<162x128xf32, #tpu.memory_space<vmem>>, vector<162x128xf32>,
    %cst_36 = arith.constant 0.000000e+00 : f32
    %61 = vector.broadcast %cst_36 : f32 to vector<64x128xf32>
    %c0_37 = arith.constant 0 : index
    %c0_38 = arith.constant 0 : index
    %62 = vector.load %arg21[%c0_37, %c0_38] : memref<64x128xf32, #tpu.memory_space<vmem>>, vector<64x128xf32>
    tpu.vector_store %arg21[%c0_37, %c0_38], %61 {strides = array<i32>} : memref<64x128xf32, #tpu.memory_space<vmem>>, vector<64x128xf32>,
    %c0_i32_39 = arith.constant 0 : i32
    %c162_i32_40 = arith.constant 162 : i32
    %63 = arith.addi %c0_i32_39, %c162_i32_40 : i32
    %c1_i32_41 = arith.constant 1 : i32
    scf.for %arg22 = %c0_i32_39 to %63 step %c1_i32_41  : i32 {
      %108 = arith.index_cast %arg22 : i32 to index
      %109 = memref.load %arg2[%108] : memref<162xi32, #tpu.memory_space<smem>>
      %110 = arith.index_cast %109 : i32 to index
      %c0_69 = arith.constant 0 : index
      %111 = vector.load %arg21[%110, %c0_69] : memref<64x128xf32, #tpu.memory_space<vmem>>, vector<1x128xf32>
      %112 = arith.index_cast %arg22 : i32 to index
      %c0_70 = arith.constant 0 : index
      %113 = vector.load %arg20[%112, %c0_70] : memref<162x128xf32, #tpu.memory_space<vmem>>, vector<1x128xf32>
      %114 = arith.addf %111, %113 : vector<1x128xf32>
      %115 = arith.index_cast %109 : i32 to index
      %c0_71 = arith.constant 0 : index
      %116 = vector.load %arg21[%115, %c0_71] : memref<64x128xf32, #tpu.memory_space<vmem>>, vector<1x128xf32>
      tpu.vector_store %arg21[%115, %c0_71], %114 {strides = array<i32>} : memref<64x128xf32, #tpu.memory_space<vmem>>, vector<1x128xf32>,
    }
    %c162_i32_42 = arith.constant 162 : i32
    %c0_43 = arith.constant 0 : index
    %c0_44 = arith.constant 0 : index
    %64 = vector.load %arg21[%c0_43, %c0_44] : memref<64x128xf32, #tpu.memory_space<vmem>>, vector<64x128xf32>
    %c0_45 = arith.constant 0 : index
    %c0_46 = arith.constant 0 : index
    %65 = vector.load %arg10[%c0_45, %c0_46] : memref<128x16xf32, #tpu.memory_space<vmem>>, vector<128x16xf32>
    %cst_47 = arith.constant dense<0.000000e+00> : vector<64x16xf32>
    %66 = tpu.matmul %64, %65, %cst_47 {dimension_numbers = #tpu.dot_dimension_numbers<[1], [0], [0], [1], [0, 0, 1, 1], [], []>} : vector<64x128xf32>, vector<128x16xf32>, vector<64x16xf32> -> vector<64x16xf32>
    %c0_48 = arith.constant 0 : index
    %c0_49 = arith.constant 0 : index
    %67 = vector.load %arg11[%c0_48, %c0_49] : memref<64x1xf32, #tpu.memory_space<vmem>>, vector<64x1xf32>
    %68 = vector.broadcast %67 : vector<64x1xf32> to vector<64x16xf32>
    %69 = arith.mulf %66, %68 : vector<64x16xf32>
    %c0_50 = arith.constant 0 : index
    %c0_51 = arith.constant 0 : index
    %70 = vector.load %arg12[%c0_50, %c0_51] : memref<1x16xf32, #tpu.memory_space<vmem>>, vector<1x16xf32>
    %c0_52 = arith.constant 0 : index
    %c0_53 = arith.constant 0 : index
    %71 = vector.load %arg13[%c0_52, %c0_53] : memref<1x16xf32, #tpu.memory_space<vmem>>, vector<1x16xf32>
    %cst_54 = arith.constant dense<0.000000e+00> : vector<16xf32>
    %72 = vector.multi_reduction <add>, %69, %cst_54 [0] : vector<64x16xf32> to vector<16xf32>
    %73 = vector.shape_cast %72 : vector<16xf32> to vector<1x16xf32>
    %cst_55 = arith.constant 6.400000e+01 : f32
    %74 = vector.broadcast %cst_55 : f32 to vector<1x16xf32>
    %75 = arith.divf %73, %74 : vector<1x16xf32>
    %76 = vector.broadcast %75 : vector<1x16xf32> to vector<64x16xf32>
    %77 = arith.subf %69, %76 : vector<64x16xf32>
    %78 = arith.mulf %77, %77 : vector<64x16xf32>
    %cst_56 = arith.constant dense<0.000000e+00> : vector<16xf32>
    %79 = vector.multi_reduction <add>, %78, %cst_56 [0] : vector<64x16xf32> to vector<16xf32>
    %80 = vector.shape_cast %79 : vector<16xf32> to vector<1x16xf32>
    %cst_57 = arith.constant 6.400000e+01 : f32
    %81 = vector.broadcast %cst_57 : f32 to vector<1x16xf32>
    %82 = arith.divf %80, %81 : vector<1x16xf32>
    %83 = vector.broadcast %75 : vector<1x16xf32> to vector<64x16xf32>
    %84 = arith.subf %69, %83 : vector<64x16xf32>
    %cst_58 = arith.constant 9.99999974E-6 : f32
    %85 = vector.broadcast %cst_58 : f32 to vector<1x16xf32>
    %86 = arith.addf %82, %85 : vector<1x16xf32>
    %87 = math.rsqrt %86 : vector<1x16xf32>
    %88 = vector.broadcast %87 : vector<1x16xf32> to vector<64x16xf32>
    %89 = arith.mulf %84, %88 : vector<64x16xf32>
    %90 = vector.broadcast %70 : vector<1x16xf32> to vector<64x16xf32>
    %91 = arith.mulf %89, %90 : vector<64x16xf32>
    %92 = vector.broadcast %71 : vector<1x16xf32> to vector<64x16xf32>
    %93 = arith.addf %91, %92 : vector<64x16xf32>
    %cst_59 = arith.constant 0.000000e+00 : f32
    %94 = vector.broadcast %cst_59 : f32 to vector<64x16xf32>
    %95 = arith.cmpf ogt, %93, %94 : vector<64x16xf32>
    %cst_60 = arith.constant 0.000000e+00 : f32
    %96 = vector.broadcast %cst_60 : f32 to vector<64x16xf32>
    %97 = arith.minimumf %93, %96 : vector<64x16xf32>
    %98 = math.exp %97 : vector<64x16xf32>
    %cst_61 = arith.constant 1.000000e+00 : f32
    %99 = vector.broadcast %cst_61 : f32 to vector<64x16xf32>
    %100 = arith.subf %98, %99 : vector<64x16xf32>
    %101 = arith.select %95, %93, %100 : vector<64x16xi1>, vector<64x16xf32>
    %c0_62 = arith.constant 0 : index
    %c0_63 = arith.constant 0 : index
    %102 = vector.load %arg14[%c0_62, %c0_63] : memref<16x32xf32, #tpu.memory_space<vmem>>, vector<16x32xf32>
    %cst_64 = arith.constant dense<0.000000e+00> : vector<64x32xf32>
    %103 = tpu.matmul %101, %102, %cst_64 {dimension_numbers = #tpu.dot_dimension_numbers<[1], [0], [0], [1], [0, 0, 1, 1], [], []>} : vector<64x16xf32>, vector<16x32xf32>, vector<64x32xf32> -> vector<64x32xf32>
    %c0_65 = arith.constant 0 : index
    %c0_66 = arith.constant 0 : index
    %104 = vector.load %arg15[%c0_65, %c0_66] : memref<1x32xf32, #tpu.memory_space<vmem>>, vector<1x32xf32>
    %105 = vector.broadcast %104 : vector<1x32xf32> to vector<64x32xf32>
    %106 = arith.addf %103, %105 : vector<64x32xf32>
    %c0_67 = arith.constant 0 : index
    %c0_68 = arith.constant 0 : index
    %107 = vector.load %arg16[%c0_67, %c0_68] : memref<64x32xf32, #tpu.memory_space<vmem>>, vector<64x32xf32>
    tpu.vector_store %arg16[%c0_67, %c0_68], %106 {strides = array<i32>} : memref<64x32xf32, #tpu.memory_space<vmem>>, vector<64x32xf32>,
    return
  }
  func.func @transform_0(%arg0: i32, %arg1: memref<162xi32, #tpu.memory_space<smem>>, %arg2: memref<162xi32, #tpu.memory_space<smem>>) -> (i32, i32) {
    %c0_i32 = arith.constant 0 : i32
    %c0_i32_0 = arith.constant 0 : i32
    %c0_i32_1 = arith.constant 0 : i32
    return %c0_i32, %c0_i32_0 : i32, i32
  }
  func.func @transform_1(%arg0: i32, %arg1: memref<162xi32, #tpu.memory_space<smem>>, %arg2: memref<162xi32, #tpu.memory_space<smem>>) -> (i32, i32) {
    %c0_i32 = arith.constant 0 : i32
    %c0_i32_0 = arith.constant 0 : i32
    %c0_i32_1 = arith.constant 0 : i32
    return %c0_i32, %c0_i32_0 : i32, i32
  }
  func.func @transform_2(%arg0: i32, %arg1: memref<162xi32, #tpu.memory_space<smem>>, %arg2: memref<162xi32, #tpu.memory_space<smem>>) -> (i32, i32) {
    %c0_i32 = arith.constant 0 : i32
    %c0_i32_0 = arith.constant 0 : i32
    %c0_i32_1 = arith.constant 0 : i32
    return %c0_i32, %c0_i32_0 : i32, i32
  }
  func.func @transform_3(%arg0: i32, %arg1: memref<162xi32, #tpu.memory_space<smem>>, %arg2: memref<162xi32, #tpu.memory_space<smem>>) -> (i32, i32) {
    %c0_i32 = arith.constant 0 : i32
    %c0_i32_0 = arith.constant 0 : i32
    %c0_i32_1 = arith.constant 0 : i32
    return %c0_i32, %c0_i32_0 : i32, i32
  }
  func.func @transform_4(%arg0: i32, %arg1: memref<162xi32, #tpu.memory_space<smem>>, %arg2: memref<162xi32, #tpu.memory_space<smem>>) -> (i32, i32) {
    %c0_i32 = arith.constant 0 : i32
    %c0_i32_0 = arith.constant 0 : i32
    %c0_i32_1 = arith.constant 0 : i32
    return %c0_i32, %c0_i32_0 : i32, i32
  }
  func.func @transform_5(%arg0: i32, %arg1: memref<162xi32, #tpu.memory_space<smem>>, %arg2: memref<162xi32, #tpu.memory_space<smem>>) -> (i32, i32) {
    %c0_i32 = arith.constant 0 : i32
    %c0_i32_0 = arith.constant 0 : i32
    %c0_i32_1 = arith.constant 0 : i32
    return %c0_i32, %c0_i32_0 : i32, i32
  }
  func.func @transform_6(%arg0: i32, %arg1: memref<162xi32, #tpu.memory_space<smem>>, %arg2: memref<162xi32, #tpu.memory_space<smem>>) -> (i32, i32) {
    %c0_i32 = arith.constant 0 : i32
    %c0_i32_0 = arith.constant 0 : i32
    %c0_i32_1 = arith.constant 0 : i32
    return %c0_i32, %c0_i32_0 : i32, i32
  }
  func.func @transform_7(%arg0: i32, %arg1: memref<162xi32, #tpu.memory_space<smem>>, %arg2: memref<162xi32, #tpu.memory_space<smem>>) -> (i32, i32) {
    %c0_i32 = arith.constant 0 : i32
    %c0_i32_0 = arith.constant 0 : i32
    %c0_i32_1 = arith.constant 0 : i32
    return %c0_i32, %c0_i32_0 : i32, i32
  }
  func.func @transform_8(%arg0: i32, %arg1: memref<162xi32, #tpu.memory_space<smem>>, %arg2: memref<162xi32, #tpu.memory_space<smem>>) -> (i32, i32) {
    %c0_i32 = arith.constant 0 : i32
    %c0_i32_0 = arith.constant 0 : i32
    %c0_i32_1 = arith.constant 0 : i32
    return %c0_i32, %c0_i32_0 : i32, i32
  }
  func.func @transform_9(%arg0: i32, %arg1: memref<162xi32, #tpu.memory_space<smem>>, %arg2: memref<162xi32, #tpu.memory_space<smem>>) -> (i32, i32) {
    %c0_i32 = arith.constant 0 : i32
    %c0_i32_0 = arith.constant 0 : i32
    %c0_i32_1 = arith.constant 0 : i32
    return %c0_i32, %c0_i32_0 : i32, i32
  }
  func.func @transform_10(%arg0: i32, %arg1: memref<162xi32, #tpu.memory_space<smem>>, %arg2: memref<162xi32, #tpu.memory_space<smem>>) -> (i32, i32) {
    %c0_i32 = arith.constant 0 : i32
    %c0_i32_0 = arith.constant 0 : i32
    %c0_i32_1 = arith.constant 0 : i32
    return %c0_i32, %c0_i32_0 : i32, i32
  }
  func.func @transform_11(%arg0: i32, %arg1: memref<162xi32, #tpu.memory_space<smem>>, %arg2: memref<162xi32, #tpu.memory_space<smem>>) -> (i32, i32) {
    %c0_i32 = arith.constant 0 : i32
    %c0_i32_0 = arith.constant 0 : i32
    %c0_i32_1 = arith.constant 0 : i32
    return %c0_i32, %c0_i32_0 : i32, i32
  }
  func.func @transform_12(%arg0: i32, %arg1: memref<162xi32, #tpu.memory_space<smem>>, %arg2: memref<162xi32, #tpu.memory_space<smem>>) -> (i32, i32) {
    %c0_i32 = arith.constant 0 : i32
    %c0_i32_0 = arith.constant 0 : i32
    %c0_i32_1 = arith.constant 0 : i32
    return %c0_i32, %c0_i32_0 : i32, i32
  }
  func.func @transform_13(%arg0: i32, %arg1: memref<162xi32, #tpu.memory_space<smem>>, %arg2: memref<162xi32, #tpu.memory_space<smem>>) -> (i32, i32) {
    %c0_i32 = arith.constant 0 : i32
    %c0_i32_0 = arith.constant 0 : i32
    %c0_i32_1 = arith.constant 0 : i32
    return %c0_i32, %c0_i32_0 : i32, i32
  }
}

</mosaic_0001>

<llo_original>
// kernel: tpu_custom_call.1
$region0: #{tpu_custom_call.1}
  #allocation0 [shape = 'u32[]', space=smem, size = 0x4, offset = 0x4, fixed_abs, tag = 'smem constant byte address 0x4 - core index']
  #allocation1 [shape = 'u32[144,128]{1,0:T(1,128)}', space=vmem, size = 0x12000, scoped, tag = 'internal scratch']
  #allocation2 [shape = 'f32[64,8]{1,0:T(8,128)}', space=vmem, size = 0x8000, scoped, tag = 'scratch operand']
  #allocation3 [shape = 'f32[64,128]{1,0:T(8,128)}', space=vmem, size = 0x8000, scoped, tag = 'scratch operand']
  #allocation4 [shape = 'f32[162,8]{1,0:T(8,128)}', space=vmem, size = 0x15000, scoped, tag = 'scratch operand']
  #allocation5 [shape = 'f32[162,128]{1,0:T(8,128)}', space=vmem, size = 0x15000, scoped, tag = 'scratch operand']
  #allocation6 [shape = 'f32[64,128]{1,0:T(8,128)}', space=vmem, size = 0x8000, scoped, tag = 'scratch operand']
  #allocation7 [shape = 's32[1]{0}', space=sflag, size = 0x4, scoped, tag = 'scoped memory for tpu_custom_call.1']
  #allocation8 [shape = 'u8[1024]{0}', space=smem, size = 0x400, scoped, tag = 'prefetched SMEM operand 0']
  #allocation9 [shape = 'u8[1024]{0}', space=smem, size = 0x400, scoped, tag = 'prefetched SMEM operand 1']
  %s0 = inlined_call_operand.vmem [shape: s32[162], index: 0, kind: input, shape index: {}]
  %s1 = inlined_call_operand.vmem [shape: s32[162], index: 1, kind: input, shape index: {}]
  %s2 = inlined_call_operand.vmem [shape: f32[64,32], index: 2, kind: input, shape index: {}]
  %s3 = inlined_call_operand.vmem [shape: f32[32,16], index: 3, kind: input, shape index: {}]
  %s4 = inlined_call_operand.vmem [shape: f32[1,16], index: 4, kind: input, shape index: {}]
  %s5 = inlined_call_operand.vmem [shape: f32[1,16], index: 5, kind: input, shape index: {}]
  %s6 = inlined_call_operand.vmem [shape: f32[16,136], index: 6, kind: input, shape index: {}]
  %s7 = inlined_call_operand.vmem [shape: f32[1,8], index: 7, kind: input, shape index: {}]
  %s8 = inlined_call_operand.vmem [shape: f32[8,128], index: 8, kind: input, shape index: {}]
  %s9 = inlined_call_operand.vmem [shape: f32[128,16], index: 9, kind: input, shape index: {}]
  %s10 = inlined_call_operand.vmem [shape: f32[64,1], index: 10, kind: input, shape index: {}]
  %s11 = inlined_call_operand.vmem [shape: f32[1,16], index: 11, kind: input, shape index: {}]
  %s12 = inlined_call_operand.vmem [shape: f32[1,16], index: 12, kind: input, shape index: {}]
  %s13 = inlined_call_operand.vmem [shape: f32[16,32], index: 13, kind: input, shape index: {}]
  %s14 = inlined_call_operand.vmem [shape: f32[1,32], index: 14, kind: input, shape index: {}]
  %s15 = inlined_call_operand.vmem [shape: f32[64,32], index: 15, kind: output, shape index: {}]
  %s16 = sld [smem:[#allocation0]]
  $region76: #{tpu_custom_call.1} parent=0
    _
  %s18 = ssub.s32 1, %s16
  %s19 = scalar_select 0, %s18, %s16
  %s20 = sshll.u32 %s0, 4
  %s21 = int_to_ptr.vmem [resolvable:$true] %s20
  %23 = dma.vmem_to_smem %s21, 32, [#allocation8], [#allocation7]
  %s24 = sshll.u32 %s1, 4
  %s25 = int_to_ptr.vmem [resolvable:$true] %s24
  %27 = dma.vmem_to_smem %s25, 32, [#allocation9], [#allocation7]
  %28 = dma.done [#allocation7], 64
  %29 = sfence
  // Predicated region
  $region2: #{tpu_custom_call.1} parent=0 // pred_check
    _
  $region3: #{tpu_custom_call.1} parent=0 // pred_check_branch
    %31 = sbr.rel (0) target = $region5
  $region4: #{tpu_custom_call.1} parent=0 // pred_region
    _
  $region5: #{tpu_custom_call.1} parent=0 // pred_fallthru
    _
  // Predicated region
  $region6: #{tpu_custom_call.1} parent=0 // pred_check
    _
  $region7: #{tpu_custom_call.1} parent=0 // pred_check_branch
    %33 = sbr.rel (0) target = $region9
  $region8: #{tpu_custom_call.1} parent=0 // pred_region
    _
  $region9: #{tpu_custom_call.1} parent=0 // pred_fallthru
    _
  // Predicated region
  $region10: #{tpu_custom_call.1} parent=0 // pred_check
    _
  $region11: #{tpu_custom_call.1} parent=0 // pred_check_branch
    %35 = sbr.rel (0) target = $region13
  $region12: #{tpu_custom_call.1} parent=0 // pred_region
    _
  $region13: #{tpu_custom_call.1} parent=0 // pred_fallthru
    _
  // Predicated region
  $region14: #{tpu_custom_call.1} parent=0 // pred_check
    _
  $region15: #{tpu_custom_call.1} parent=0 // pred_check_branch
    %37 = sbr.rel (0) target = $region17
  $region16: #{tpu_custom_call.1} parent=0 // pred_region
    _
  $region17: #{tpu_custom_call.1} parent=0 // pred_fallthru
    _
  // Predicated region
  $region18: #{tpu_custom_call.1} parent=0 // pred_check
    _
  $region19: #{tpu_custom_call.1} parent=0 // pred_check_branch
    %39 = sbr.rel (0) target = $region21
  $region20: #{tpu_custom_call.1} parent=0 // pred_region
    _
  $region21: #{tpu_custom_call.1} parent=0 // pred_fallthru
    _
  // Predicated region
  $region22: #{tpu_custom_call.1} parent=0 // pred_check
    _
  $region23: #{tpu_custom_call.1} parent=0 // pred_check_branch
    %41 = sbr.rel (0) target = $region25
  $region24: #{tpu_custom_call.1} parent=0 // pred_region
    _
  $region25: #{tpu_custom_call.1} parent=0 // pred_fallthru
    _
  // Predicated region
  $region26: #{tpu_custom_call.1} parent=0 // pred_check
    _
  $region27: #{tpu_custom_call.1} parent=0 // pred_check_branch
    %43 = sbr.rel (0) target = $region29
  $region28: #{tpu_custom_call.1} parent=0 // pred_region
    _
  $region29: #{tpu_custom_call.1} parent=0 // pred_fallthru
    _
  // Predicated region
  $region30: #{tpu_custom_call.1} parent=0 // pred_check
    _
  $region31: #{tpu_custom_call.1} parent=0 // pred_check_branch
    %45 = sbr.rel (0) target = $region33
  $region32: #{tpu_custom_call.1} parent=0 // pred_region
    _
  $region33: #{tpu_custom_call.1} parent=0 // pred_fallthru
    _
  // Predicated region
  $region34: #{tpu_custom_call.1} parent=0 // pred_check
    _
  $region35: #{tpu_custom_call.1} parent=0 // pred_check_branch
    %47 = sbr.rel (0) target = $region37
  $region36: #{tpu_custom_call.1} parent=0 // pred_region
    _
  $region37: #{tpu_custom_call.1} parent=0 // pred_fallthru
    _
  // Predicated region
  $region38: #{tpu_custom_call.1} parent=0 // pred_check
    _
  $region39: #{tpu_custom_call.1} parent=0 // pred_check_branch
    %49 = sbr.rel (0) target = $region41
  $region40: #{tpu_custom_call.1} parent=0 // pred_region
    _
  $region41: #{tpu_custom_call.1} parent=0 // pred_fallthru
    _
  // Predicated region
  $region42: #{tpu_custom_call.1} parent=0 // pred_check
    _
  $region43: #{tpu_custom_call.1} parent=0 // pred_check_branch
    %51 = sbr.rel (0) target = $region45
  $region44: #{tpu_custom_call.1} parent=0 // pred_region
    _
  $region45: #{tpu_custom_call.1} parent=0 // pred_fallthru
    _
  // Predicated region
  $region46: #{tpu_custom_call.1} parent=0 // pred_check
    _
  $region47: #{tpu_custom_call.1} parent=0 // pred_check_branch
    %53 = sbr.rel (0) target = $region49
  $region48: #{tpu_custom_call.1} parent=0 // pred_region
    _
  $region49: #{tpu_custom_call.1} parent=0 // pred_fallthru
    _
  // Predicated region
  $region50: #{tpu_custom_call.1} parent=0 // pred_check
    _
  $region51: #{tpu_custom_call.1} parent=0 // pred_check_branch
    %55 = sbr.rel (0) target = $region53
  $region52: #{tpu_custom_call.1} parent=0 // pred_region
    _
  $region53: #{tpu_custom_call.1} parent=0 // pred_fallthru
    _
  %v56 = vld [vmem:[%s2] sm:$0xff]
  %v57 = vld [vmem:[%s2 + $0x8] sm:$0xff]
  %v58 = vld [vmem:[%s2 + $0x10] sm:$0xff]
  %v59 = vld [vmem:[%s2 + $0x18] sm:$0xff]
  %v60 = vld [vmem:[%s2 + $0x20] sm:$0xff]
  %v61 = vld [vmem:[%s2 + $0x28] sm:$0xff]
  %v62 = vld [vmem:[%s2 + $0x30] sm:$0xff]
  %v63 = vld [vmem:[%s2 + $0x38] sm:$0xff]
  %v64 = vld [vmem:[%s3] sm:$0xff]
  %v65 = vld [vmem:[%s3 + $0x8] sm:$0xff]
  %v66 = vld [vmem:[%s3 + $0x10] sm:$0xff]
  %v67 = vld [vmem:[%s3 + $0x18] sm:$0xff]
  %vm68 = vcmask 261120
  %v70 = vsel %vm68, %v56, 0
  %v73 = vsel %vm68, %v57, 0
  %v76 = vsel %vm68, %v58, 0
  %v79 = vsel %vm68, %v59, 0
  %v82 = vsel %vm68, %v60, 0
  %v85 = vsel %vm68, %v61, 0
  %v88 = vsel %vm68, %v62, 0
  %v91 = vsel %vm68, %v63, 0
  %93 = vmatprep.subr.mxu0 0.0
  %94 = vmatpush1.msra.mxu0 %v64
  %95 = vmatprep.subr.mxu0 0.0
  %96 = vmatpush1.msra.mxu0 %v65
  %97 = vmatprep.subr.mxu0 0.0
  %98 = vmatpush1.msra.mxu0 %v66
  %99 = vmatprep.subr.mxu0 0.0
  %100 = vmatpush1.msra.mxu0 %v67
  %101 = vmatprep.subr.mxu0 0.0
  %102 = vmatpush1.msra.mxu0 0.0
  %103 = vmatprep.subr.mxu0 0.0
  %104 = vmatpush1.msra.mxu0 0.0
  %105 = vmatprep.subr.mxu0 0.0
  %106 = vmatpush1.msra.mxu0 0.0
  %107 = vmatprep.subr.mxu0 0.0
  %108 = vmatpush1.msra.mxu0 0.0
  %109 = vmatprep.subr.mxu0 0.0
  %110 = vmatpush1.msra.mxu0 0.0
  %111 = vmatprep.subr.mxu0 0.0
  %112 = vmatpush1.msra.mxu0 0.0
  %113 = vmatprep.subr.mxu0 0.0
  %114 = vmatpush1.msra.mxu0 0.0
  %115 = vmatprep.subr.mxu0 0.0
  %116 = vmatpush1.msra.mxu0 0.0
  %117 = vmatprep.subr.mxu0 0.0
  %118 = vmatpush1.msra.mxu0 0.0
  %119 = vmatprep.subr.mxu0 0.0
  %120 = vmatpush1.msra.mxu0 0.0
  %121 = vmatprep.subr.mxu0 0.0
  %122 = vmatpush1.msra.mxu0 0.0
  %123 = vmatprep.subr.mxu0 0.0
  %124 = vmatpush1.msra.mxu0 0.0
  %125 = vmatprep.subr.mxu0 0.0
  %126 = vmatpush1.msra.mxu0 0.0
  %127 = vmatprep.subr.mxu0 0.0
  %128 = vmatpush1.msra.mxu0 0.0
  %129 = vmatprep.subr.mxu0 0.0
  %130 = vmatpush1.msra.mxu0 0.0
  %131 = vmatprep.subr.mxu0 0.0
  %132 = vmatpush1.msra.mxu0 0.0
  %133 = vmatprep.subr.mxu0 0.0
  %134 = vmatpush1.msra.mxu0 0.0
  %135 = vmatprep.subr.mxu0 0.0
  %136 = vmatpush1.msra.mxu0 0.0
  %137 = vmatprep.subr.mxu0 0.0
  %138 = vmatpush1.msra.mxu0 0.0
  %139 = vmatprep.subr.mxu0 0.0
  %140 = vmatpush1.msra.mxu0 0.0
  %141 = vmatprep.subr.mxu0 0.0
  %142 = vmatpush1.msra.mxu0 0.0
  %143 = vmatprep.subr.mxu0 0.0
  %144 = vmatpush1.msra.mxu0 0.0
  %145 = vmatprep.subr.mxu0 0.0
  %146 = vmatpush1.msra.mxu0 0.0
  %147 = vmatprep.subr.mxu0 0.0
  %148 = vmatpush1.msra.mxu0 0.0
  %149 = vmatprep.subr.mxu0 0.0
  %150 = vmatpush1.msra.mxu0 0.0
  %151 = vmatprep.subr.mxu0 0.0
  %152 = vmatpush1.msra.mxu0 0.0
  %153 = vmatprep.subr.mxu0 0.0
  %154 = vmatpush1.msra.mxu0 0.0
  %155 = vmatprep.subr.mxu0 0.0
  %156 = vmatpush1.msra.mxu0 0.0
  %157 = vmatprep.mubr.f32.mxu0 0.0
  %158 = vmatmul.mubr.f32.gmra.mrb[0].mxu0 %v70
  %v159 = vpop.f32.mrb[0].mxu0
  %v160 = vadd.f32 0.0, %v159
  %v161 = vpop.f32.mrb[0].mxu0
  %162 = vmatprep.mubr.f32.mxu0 0.0
  %163 = vmatmul.mubr.f32.gmra.mrb[0].mxu0 %v73
  %v164 = vpop.f32.mrb[0].mxu0
  %v165 = vadd.f32 0.0, %v164
  %v166 = vpop.f32.mrb[0].mxu0
  %167 = vmatprep.mubr.f32.mxu0 0.0
  %168 = vmatmul.mubr.f32.gmra.mrb[0].mxu0 %v76
  %v169 = vpop.f32.mrb[0].mxu0
  %v170 = vadd.f32 0.0, %v169
  %v171 = vpop.f32.mrb[0].mxu0
  %172 = vmatprep.mubr.f32.mxu0 0.0
  %173 = vmatmul.mubr.f32.gmra.mrb[0].mxu0 %v79
  %v174 = vpop.f32.mrb[0].mxu0
  %v175 = vadd.f32 0.0, %v174
  %v176 = vpop.f32.mrb[0].mxu0
  %177 = vmatprep.mubr.f32.mxu0 0.0
  %178 = vmatmul.mubr.f32.gmra.mrb[0].mxu0 %v82
  %v179 = vpop.f32.mrb[0].mxu0
  %v180 = vadd.f32 0.0, %v179
  %v181 = vpop.f32.mrb[0].mxu0
  %182 = vmatprep.mubr.f32.mxu0 0.0
  %183 = vmatmul.mubr.f32.gmra.mrb[0].mxu0 %v85
  %v184 = vpop.f32.mrb[0].mxu0
  %v185 = vadd.f32 0.0, %v184
  %v186 = vpop.f32.mrb[0].mxu0
  %187 = vmatprep.mubr.f32.mxu0 0.0
  %188 = vmatmul.mubr.f32.gmra.mrb[0].mxu0 %v88
  %v189 = vpop.f32.mrb[0].mxu0
  %v190 = vadd.f32 0.0, %v189
  %v191 = vpop.f32.mrb[0].mxu0
  %192 = vmatprep.mubr.f32.mxu0 0.0
  %193 = vmatmul.mubr.f32.gmra.mrb[0].mxu0 %v91
  %v194 = vpop.f32.mrb[0].mxu0
  %v195 = vadd.f32 0.0, %v194
  %v196 = vpop.f32.mrb[0].mxu0
  %197 = vdwg.mxu0
  %v198 = vld [vmem:[%s4] sm:$0x1]
  %v199 = vld [vmem:[%s5] sm:$0x1]
  %vm200 = vcmask 130048
  %v201 = vsel %vm200, %v160, 0.0
  %v202 = vsel %vm200, %v165, 0.0
  %v203 = vadd.f32 %v201, %v202
  %v204 = vsel %vm200, %v170, 0.0
  %v205 = vadd.f32 %v203, %v204
  %v206 = vsel %vm200, %v175, 0.0
  %v207 = vadd.f32 %v205, %v206
  %v208 = vsel %vm200, %v180, 0.0
  %v209 = vadd.f32 %v207, %v208
  %v210 = vsel %vm200, %v185, 0.0
  %v211 = vadd.f32 %v209, %v210
  %v212 = vsel %vm200, %v190, 0.0
  %v213 = vadd.f32 %v211, %v212
  %v214 = vsel %vm200, %v195, 0.0
  %v215 = vadd.f32 %v213, %v214
  %v216 = vrot.slane %v215, 4
  %v217 = vadd.f32 %v215, %v216
  %v218 = vrot.slane %v217, 2
  %v219 = vadd.f32 %v217, %v218
  %v220 = vrot.slane %v219, 1
  %v221 = vadd.f32 %v219, %v220
  %v222 = vrcp.pop 64.0
  %v223 = vmul.f32 %v221, %v222
  %v224 = vsub.f32 %v160, %v223
  %v225 = vsub.f32 %v165, %v223
  %v226 = vsub.f32 %v170, %v223
  %v227 = vsub.f32 %v175, %v223
  %v228 = vsub.f32 %v180, %v223
  %v229 = vsub.f32 %v185, %v223
  %v230 = vsub.f32 %v190, %v223
  %v231 = vsub.f32 %v195, %v223
  %v232 = vmul.f32 %v224, %v224
  %v233 = vmul.f32 %v225, %v225
  %v234 = vmul.f32 %v226, %v226
  %v235 = vmul.f32 %v227, %v227
  %v236 = vmul.f32 %v228, %v228
  %v237 = vmul.f32 %v229, %v229
  %v238 = vmul.f32 %v230, %v230
  %v239 = vmul.f32 %v231, %v231
  %v240 = vsel %vm200, %v232, 0.0
  %v241 = vsel %vm200, %v233, 0.0
  %v242 = vadd.f32 %v240, %v241
  %v243 = vsel %vm200, %v234, 0.0
  %v244 = vadd.f32 %v242, %v243
  %v245 = vsel %vm200, %v235, 0.0
  %v246 = vadd.f32 %v244, %v245
  %v247 = vsel %vm200, %v236, 0.0
  %v248 = vadd.f32 %v246, %v247
  %v249 = vsel %vm200, %v237, 0.0
  %v250 = vadd.f32 %v248, %v249
  %v251 = vsel %vm200, %v238, 0.0
  %v252 = vadd.f32 %v250, %v251
  %v253 = vsel %vm200, %v239, 0.0
  %v254 = vadd.f32 %v252, %v253
  %v255 = vrot.slane %v254, 4
  %v256 = vadd.f32 %v254, %v255
  %v257 = vrot.slane %v256, 2
  %v258 = vadd.f32 %v256, %v257
  %v259 = vrot.slane %v258, 1
  %v260 = vadd.f32 %v258, %v259
  %v261 = vmul.f32 %v260, %v222
  %v262 = vadd.f32 %v261, 1e-05
  %v263 = vrsqrt.pop %v262
  %v264 = vmul.f32 %v224, %v263
  %v265 = vmul.f32 %v225, %v263
  %v266 = vmul.f32 %v226, %v263
  %v267 = vmul.f32 %v227, %v263
  %v268 = vmul.f32 %v228, %v263
  %v269 = vmul.f32 %v229, %v263
  %v270 = vmul.f32 %v230, %v263
  %v271 = vmul.f32 %v231, %v263
  %v273 = vlaneseq
  %v274 = vshrl.u32 %v273, 7
  %v275 = vsub.s32 0, %v274
  %v276 = vrot.slane %v198, %v275
  %v278 = vmul.f32 %v264, %v276
  %v279 = vmul.f32 %v265, %v276
  %v280 = vmul.f32 %v266, %v276
  %v281 = vmul.f32 %v267, %v276
  %v282 = vmul.f32 %v268, %v276
  %v283 = vmul.f32 %v269, %v276
  %v284 = vmul.f32 %v270, %v276
  %v285 = vmul.f32 %v271, %v276
  %v287 = vlaneseq
  %v288 = vshrl.u32 %v287, 7
  %v289 = vsub.s32 0, %v288
  %v290 = vrot.slane %v199, %v289
  %v292 = vadd.f32 %v278, %v290
  %v293 = vadd.f32 %v279, %v290
  %v294 = vadd.f32 %v280, %v290
  %v295 = vadd.f32 %v281, %v290
  %v296 = vadd.f32 %v282, %v290
  %v297 = vadd.f32 %v283, %v290
  %v298 = vadd.f32 %v284, %v290
  %v299 = vadd.f32 %v285, %v290
  %vm300 = vcmp.gt.f32.partialorder %v292, 0.0
  %vm301 = vcmp.gt.f32.partialorder %v293, 0.0
  %vm302 = vcmp.gt.f32.partialorder %v294, 0.0
  %vm303 = vcmp.gt.f32.partialorder %v295, 0.0
  %vm304 = vcmp.gt.f32.partialorder %v296, 0.0
  %vm305 = vcmp.gt.f32.partialorder %v297, 0.0
  %vm306 = vcmp.gt.f32.partialorder %v298, 0.0
  %vm307 = vcmp.gt.f32.partialorder %v299, 0.0
  %v308 = vmin.f32 %v292, 0.0
  %v309 = vmin.f32 %v293, 0.0
  %v310 = vmin.f32 %v294, 0.0
  %v311 = vmin.f32 %v295, 0.0
  %v312 = vmin.f32 %v296, 0.0
  %v313 = vmin.f32 %v297, 0.0
  %v314 = vmin.f32 %v298, 0.0
  %v315 = vmin.f32 %v299, 0.0
  %v316 = vmul.f32 %v308, 1.442695
  %v317 = vpow.pop %v316
  %v318 = vmul.f32 %v309, 1.442695
  %v319 = vpow.pop %v318
  %v320 = vmul.f32 %v310, 1.442695
  %v321 = vpow.pop %v320
  %v322 = vmul.f32 %v311, 1.442695
  %v323 = vpow.pop %v322
  %v324 = vmul.f32 %v312, 1.442695
  %v325 = vpow.pop %v324
  %v326 = vmul.f32 %v313, 1.442695
  %v327 = vpow.pop %v326
  %v328 = vmul.f32 %v314, 1.442695
  %v329 = vpow.pop %v328
  %v330 = vmul.f32 %v315, 1.442695
  %v331 = vpow.pop %v330
  %v332 = vsub.f32 %v317, 1.0
  %v333 = vsub.f32 %v319, 1.0
  %v334 = vsub.f32 %v321, 1.0
  %v335 = vsub.f32 %v323, 1.0
  %v336 = vsub.f32 %v325, 1.0
  %v337 = vsub.f32 %v327, 1.0
  %v338 = vsub.f32 %v329, 1.0
  %v339 = vsub.f32 %v331, 1.0
  %v340 = vsel %vm300, %v292, %v332
  %v341 = vsel %vm301, %v293, %v333
  %v342 = vsel %vm302, %v294, %v334
  %v343 = vsel %vm303, %v295, %v335
  %v344 = vsel %vm304, %v296, %v336
  %v345 = vsel %vm305, %v297, %v337
  %v346 = vsel %vm306, %v298, %v338
  %v347 = vsel %vm307, %v299, %v339
  %v348 = vld [vmem:[%s6] sm:$0xff]
  %v349 = vld [vmem:[%s6 + $0x8] sm:$0xff]
  %v350 = vld [vmem:[%s6 + $0x10] sm:$0xff]
  %v351 = vld [vmem:[%s6 + $0x18] sm:$0xff]
  %v353 = vsel %vm200, %v340, 0
  %v356 = vsel %vm200, %v341, 0
  %v359 = vsel %vm200, %v342, 0
  %v362 = vsel %vm200, %v343, 0
  %v365 = vsel %vm200, %v344, 0
  %v368 = vsel %vm200, %v345, 0
  %v371 = vsel %vm200, %v346, 0
  %v374 = vsel %vm200, %v347, 0
  %376 = vmatprep.subr.mxu0 %v349
  %377 = vmatpush1.msra.mxu0 %v348
  %378 = vmatprep.subr.mxu0 %v351
  %379 = vmatpush1.msra.mxu0 %v350
  %380 = vmatprep.subr.mxu0 0.0
  %381 = vmatpush1.msra.mxu0 0.0
  %382 = vmatprep.subr.mxu0 0.0
  %383 = vmatpush1.msra.mxu0 0.0
  %384 = vmatprep.subr.mxu0 0.0
  %385 = vmatpush1.msra.mxu0 0.0
  %386 = vmatprep.subr.mxu0 0.0
  %387 = vmatpush1.msra.mxu0 0.0
  %388 = vmatprep.subr.mxu0 0.0
  %389 = vmatpush1.msra.mxu0 0.0
  %390 = vmatprep.subr.mxu0 0.0
  %391 = vmatpush1.msra.mxu0 0.0
  %392 = vmatprep.subr.mxu0 0.0
  %393 = vmatpush1.msra.mxu0 0.0
  %394 = vmatprep.subr.mxu0 0.0
  %395 = vmatpush1.msra.mxu0 0.0
  %396 = vmatprep.subr.mxu0 0.0
  %397 = vmatpush1.msra.mxu0 0.0
  %398 = vmatprep.subr.mxu0 0.0
  %399 = vmatpush1.msra.mxu0 0.0
  %400 = vmatprep.subr.mxu0 0.0
  %401 = vmatpush1.msra.mxu0 0.0
  %402 = vmatprep.subr.mxu0 0.0
  %403 = vmatpush1.msra.mxu0 0.0
  %404 = vmatprep.subr.mxu0 0.0
  %405 = vmatpush1.msra.mxu0 0.0
  %406 = vmatprep.subr.mxu0 0.0
  %407 = vmatpush1.msra.mxu0 0.0
  %408 = vmatprep.subr.mxu0 0.0
  %409 = vmatpush1.msra.mxu0 0.0
  %410 = vmatprep.subr.mxu0 0.0
  %411 = vmatpush1.msra.mxu0 0.0
  %412 = vmatprep.subr.mxu0 0.0
  %413 = vmatpush1.msra.mxu0 0.0
  %414 = vmatprep.subr.mxu0 0.0
  %415 = vmatpush1.msra.mxu0 0.0
  %416 = vmatprep.subr.mxu0 0.0
  %417 = vmatpush1.msra.mxu0 0.0
  %418 = vmatprep.subr.mxu0 0.0
  %419 = vmatpush1.msra.mxu0 0.0
  %420 = vmatprep.subr.mxu0 0.0
  %421 = vmatpush1.msra.mxu0 0.0
  %422 = vmatprep.subr.mxu0 0.0
  %423 = vmatpush1.msra.mxu0 0.0
  %424 = vmatprep.subr.mxu0 0.0
  %425 = vmatpush1.msra.mxu0 0.0
  %426 = vmatprep.subr.mxu0 0.0
  %427 = vmatpush1.msra.mxu0 0.0
  %428 = vmatprep.subr.mxu0 0.0
  %429 = vmatpush1.msra.mxu0 0.0
  %430 = vmatprep.subr.mxu0 0.0
  %431 = vmatpush1.msra.mxu0 0.0
  %432 = vmatprep.subr.mxu0 0.0
  %433 = vmatpush1.msra.mxu0 0.0
  %434 = vmatprep.subr.mxu0 0.0
  %435 = vmatpush1.msra.mxu0 0.0
  %436 = vmatprep.subr.mxu0 0.0
  %437 = vmatpush1.msra.mxu0 0.0
  %438 = vmatprep.subr.mxu0 0.0
  %439 = vmatpush1.msra.mxu0 0.0
  %440 = vmatprep.mubr.f32.mxu0 0.0
  %441 = vmatmul.mubr.f32.gmra.mrb[0].mxu0 %v353
  %v442 = vpop.f32.mrb[0].mxu0
  %v443 = vadd.f32 0.0, %v442
  %v444 = vpop.f32.mrb[0].mxu0
  %v445 = vadd.f32 0.0, %v444
  %446 = vmatprep.mubr.f32.mxu0 0.0
  %447 = vmatmul.mubr.f32.gmra.mrb[0].mxu0 %v356
  %v448 = vpop.f32.mrb[0].mxu0
  %v449 = vadd.f32 0.0, %v448
  %v450 = vpop.f32.mrb[0].mxu0
  %v451 = vadd.f32 0.0, %v450
  %452 = vmatprep.mubr.f32.mxu0 0.0
  %453 = vmatmul.mubr.f32.gmra.mrb[0].mxu0 %v359
  %v454 = vpop.f32.mrb[0].mxu0
  %v455 = vadd.f32 0.0, %v454
  %v456 = vpop.f32.mrb[0].mxu0
  %v457 = vadd.f32 0.0, %v456
  %458 = vmatprep.mubr.f32.mxu0 0.0
  %459 = vmatmul.mubr.f32.gmra.mrb[0].mxu0 %v362
  %v460 = vpop.f32.mrb[0].mxu0
  %v461 = vadd.f32 0.0, %v460
  %v462 = vpop.f32.mrb[0].mxu0
  %v463 = vadd.f32 0.0, %v462
  %464 = vmatprep.mubr.f32.mxu0 0.0
  %465 = vmatmul.mubr.f32.gmra.mrb[0].mxu0 %v365
  %v466 = vpop.f32.mrb[0].mxu0
  %v467 = vadd.f32 0.0, %v466
  %v468 = vpop.f32.mrb[0].mxu0
  %v469 = vadd.f32 0.0, %v468
  %470 = vmatprep.mubr.f32.mxu0 0.0
  %471 = vmatmul.mubr.f32.gmra.mrb[0].mxu0 %v368
  %v472 = vpop.f32.mrb[0].mxu0
  %v473 = vadd.f32 0.0, %v472
  %v474 = vpop.f32.mrb[0].mxu0
  %v475 = vadd.f32 0.0, %v474
  %476 = vmatprep.mubr.f32.mxu0 0.0
  %477 = vmatmul.mubr.f32.gmra.mrb[0].mxu0 %v371
  %v478 = vpop.f32.mrb[0].mxu0
  %v479 = vadd.f32 0.0, %v478
  %v480 = vpop.f32.mrb[0].mxu0
  %v481 = vadd.f32 0.0, %v480
  %482 = vmatprep.mubr.f32.mxu0 0.0
  %483 = vmatmul.mubr.f32.gmra.mrb[0].mxu0 %v374
  %v484 = vpop.f32.mrb[0].mxu0
  %v485 = vadd.f32 0.0, %v484
  %v486 = vpop.f32.mrb[0].mxu0
  %v487 = vadd.f32 0.0, %v486
  %488 = vdwg.mxu0
  %489 = vst [vmem:[#allocation3] sm:$0xff] %v443
  %490 = vst [vmem:[#allocation3 + $0x8] sm:$0xff] %v449
  %491 = vst [vmem:[#allocation3 + $0x10] sm:$0xff] %v455
  %492 = vst [vmem:[#allocation3 + $0x18] sm:$0xff] %v461
  %493 = vst [vmem:[#allocation3 + $0x20] sm:$0xff] %v467
  %494 = vst [vmem:[#allocation3 + $0x28] sm:$0xff] %v473
  %495 = vst [vmem:[#allocation3 + $0x30] sm:$0xff] %v479
  %496 = vst [vmem:[#allocation3 + $0x38] sm:$0xff] %v485
  %vm497 = vcmask 64512
  %498 = vst.msk [vmem:[#allocation2] sm:$0xff] %vm497, %v445
  %499 = vst.msk [vmem:[#allocation2 + $0x8] sm:$0xff] %vm497, %v451
  %500 = vst.msk [vmem:[#allocation2 + $0x10] sm:$0xff] %vm497, %v457
  %501 = vst.msk [vmem:[#allocation2 + $0x18] sm:$0xff] %vm497, %v463
  %502 = vst.msk [vmem:[#allocation2 + $0x20] sm:$0xff] %vm497, %v469
  %503 = vst.msk [vmem:[#allocation2 + $0x28] sm:$0xff] %vm497, %v475
  %504 = vst.msk [vmem:[#allocation2 + $0x30] sm:$0xff] %vm497, %v481
  %505 = vst.msk [vmem:[#allocation2 + $0x38] sm:$0xff] %vm497, %v487
  loop: start=0, step=1, limit=162
  $region54: #{tpu_custom_call.1} parent=0 // loop_pre_header
    _
  $region55: #{tpu_custom_call.1} parent=0 // loop_header
    %s507 = sphi 0, %s511
    %p508 = scmp.ge.s32.totalorder %s507, 162
  $region56: #{tpu_custom_call.1} parent=0 // loop_header_branch
    %510 = sbr.rel (%p508) target = $region60
  $region57: #{tpu_custom_call.1} parent=0 // loop_body
    %s512 = sld [smem:[#allocation8 + %s507]]
    %s513 = sld [smem:[#allocation9 + %s507]]
    %s514 = scalar_lea.vmem [#allocation3], %s512
    %v515 = vld [vmem:[%s514] sm:$0x1]
    %s516 = scalar_lea.vmem [#allocation5], %s507
    %517 = vst [vmem:[%s516] sm:$0x1] %v515
    %s518 = scalar_lea.vmem [#allocation2], %s513
    %v519 = vld [vmem:[%s518] sm:$0x1]
    %s520 = scalar_lea.vmem [#allocation2], %s512
    %v521 = vld [vmem:[%s520] sm:$0x1]
    %v522 = vsub.f32 %v519, %v521
    %s523 = scalar_lea.vmem [#allocation4], %s507
    %vm524 = vcmask 57344
    %525 = vst.msk [vmem:[%s523] sm:$0x1] %vm524, %v522
  $region58: #{tpu_custom_call.1} parent=0 // loop_footer
    %s511 = sadd.s32 1, %s507
  $region59: #{tpu_custom_call.1} parent=0 // loop_footer_branch
    %506 = sbr.rel target = $region55
  $region60: #{tpu_custom_call.1} parent=0 // loop_exit
    _
  %v526 = vld [vmem:[#allocation4] sm:$0xff]
  %v527 = vld [vmem:[#allocation4 + $0x8] sm:$0xff]
  %v528 = vld [vmem:[#allocation4 + $0x10] sm:$0xff]
  %v529 = vld [vmem:[#allocation4 + $0x18] sm:$0xff]
  %v530 = vld [vmem:[#allocation4 + $0x20] sm:$0xff]
  %v531 = vld [vmem:[#allocation4 + $0x28] sm:$0xff]
  %v532 = vld [vmem:[#allocation4 + $0x30] sm:$0xff]
  %v533 = vld [vmem:[#allocation4 + $0x38] sm:$0xff]
  %v534 = vld [vmem:[#allocation4 + $0x40] sm:$0xff]
  %v535 = vld [vmem:[#allocation4 + $0x48] sm:$0xff]
  %v536 = vld [vmem:[#allocation4 + $0x50] sm:$0xff]
  %v537 = vld [vmem:[#allocation4 + $0x58] sm:$0xff]
  %v538 = vld [vmem:[#allocation4 + $0x60] sm:$0xff]
  %v539 = vld [vmem:[#allocation4 + $0x68] sm:$0xff]
  %v540 = vld [vmem:[#allocation4 + $0x70] sm:$0xff]
  %v541 = vld [vmem:[#allocation4 + $0x78] sm:$0xff]
  %v542 = vld [vmem:[#allocation4 + $0x80] sm:$0xff]
  %v543 = vld [vmem:[#allocation4 + $0x88] sm:$0xff]
  %v544 = vld [vmem:[#allocation4 + $0x90] sm:$0xff]
  %v545 = vld [vmem:[#allocation4 + $0x98] sm:$0xff]
  %v546 = vld [vmem:[#allocation4 + $0xa0] sm:$0x3]
  %v547 = vld [vmem:[%s7] sm:$0x1]
  %v549 = vlaneseq
  %v550 = vshrl.u32 %v549, 7
  %v551 = vsub.s32 0, %v550
  %v552 = vrot.slane %v547, %v551
  %v554 = vadd.f32 %v526, %v552
  %v555 = vadd.f32 %v527, %v552
  %v556 = vadd.f32 %v528, %v552
  %v557 = vadd.f32 %v529, %v552
  %v558 = vadd.f32 %v530, %v552
  %v559 = vadd.f32 %v531, %v552
  %v560 = vadd.f32 %v532, %v552
  %v561 = vadd.f32 %v533, %v552
  %v562 = vadd.f32 %v534, %v552
  %v563 = vadd.f32 %v535, %v552
  %v564 = vadd.f32 %v536, %v552
  %v565 = vadd.f32 %v537, %v552
  %v566 = vadd.f32 %v538, %v552
  %v567 = vadd.f32 %v539, %v552
  %v568 = vadd.f32 %v540, %v552
  %v569 = vadd.f32 %v541, %v552
  %v570 = vadd.f32 %v542, %v552
  %v571 = vadd.f32 %v543, %v552
  %v572 = vadd.f32 %v544, %v552
  %v573 = vadd.f32 %v545, %v552
  %v574 = vadd.f32 %v546, %v552
  %v575 = vsel %vm497, %v554, -inf
  %576 = vmax.xlane.f32.xlu0 %v575
  %v577 = vpop.xlane.xlu0 %576
  %v578 = vsel %vm497, %v555, -inf
  %579 = vmax.xlane.f32.xlu0 %v578
  %v580 = vpop.xlane.xlu0 %579
  %v581 = vsel %vm497, %v556, -inf
  %582 = vmax.xlane.f32.xlu0 %v581
  %v583 = vpop.xlane.xlu0 %582
  %v584 = vsel %vm497, %v557, -inf
  %585 = vmax.xlane.f32.xlu0 %v584
  %v586 = vpop.xlane.xlu0 %585
  %v587 = vsel %vm497, %v558, -inf
  %588 = vmax.xlane.f32.xlu0 %v587
  %v589 = vpop.xlane.xlu0 %588
  %v590 = vsel %vm497, %v559, -inf
  %591 = vmax.xlane.f32.xlu0 %v590
  %v592 = vpop.xlane.xlu0 %591
  %v593 = vsel %vm497, %v560, -inf
  %594 = vmax.xlane.f32.xlu0 %v593
  %v595 = vpop.xlane.xlu0 %594
  %v596 = vsel %vm497, %v561, -inf
  %597 = vmax.xlane.f32.xlu0 %v596
  %v598 = vpop.xlane.xlu0 %597
  %v599 = vsel %vm497, %v562, -inf
  %600 = vmax.xlane.f32.xlu0 %v599
  %v601 = vpop.xlane.xlu0 %600
  %v602 = vsel %vm497, %v563, -inf
  %603 = vmax.xlane.f32.xlu0 %v602
  %v604 = vpop.xlane.xlu0 %603
  %v605 = vsel %vm497, %v564, -inf
  %606 = vmax.xlane.f32.xlu0 %v605
  %v607 = vpop.xlane.xlu0 %606
  %v608 = vsel %vm497, %v565, -inf
  %609 = vmax.xlane.f32.xlu0 %v608
  %v610 = vpop.xlane.xlu0 %609
  %v611 = vsel %vm497, %v566, -inf
  %612 = vmax.xlane.f32.xlu0 %v611
  %v613 = vpop.xlane.xlu0 %612
  %v614 = vsel %vm497, %v567, -inf
  %615 = vmax.xlane.f32.xlu0 %v614
  %v616 = vpop.xlane.xlu0 %615
  %v617 = vsel %vm497, %v568, -inf
  %618 = vmax.xlane.f32.xlu0 %v617
  %v619 = vpop.xlane.xlu0 %618
  %v620 = vsel %vm497, %v569, -inf
  %621 = vmax.xlane.f32.xlu0 %v620
  %v622 = vpop.xlane.xlu0 %621
  %v623 = vsel %vm497, %v570, -inf
  %624 = vmax.xlane.f32.xlu0 %v623
  %v625 = vpop.xlane.xlu0 %624
  %v626 = vsel %vm497, %v571, -inf
  %627 = vmax.xlane.f32.xlu0 %v626
  %v628 = vpop.xlane.xlu0 %627
  %v629 = vsel %vm497, %v572, -inf
  %630 = vmax.xlane.f32.xlu0 %v629
  %v631 = vpop.xlane.xlu0 %630
  %v632 = vsel %vm497, %v573, -inf
  %633 = vmax.xlane.f32.xlu0 %v632
  %v634 = vpop.xlane.xlu0 %633
  %vm635 = vcmask 58368
  %v636 = vsel %vm635, %v574, -inf
  %637 = vmax.xlane.f32.xlu0 %v636
  %v638 = vpop.xlane.xlu0 %637
  %v639 = vsub.f32 %v554, %v577
  %v640 = vsub.f32 %v555, %v580
  %v641 = vsub.f32 %v556, %v583
  %v642 = vsub.f32 %v557, %v586
  %v643 = vsub.f32 %v558, %v589
  %v644 = vsub.f32 %v559, %v592
  %v645 = vsub.f32 %v560, %v595
  %v646 = vsub.f32 %v561, %v598
  %v647 = vsub.f32 %v562, %v601
  %v648 = vsub.f32 %v563, %v604
  %v649 = vsub.f32 %v564, %v607
  %v650 = vsub.f32 %v565, %v610
  %v651 = vsub.f32 %v566, %v613
  %v652 = vsub.f32 %v567, %v616
  %v653 = vsub.f32 %v568, %v619
  %v654 = vsub.f32 %v569, %v622
  %v655 = vsub.f32 %v570, %v625
  %v656 = vsub.f32 %v571, %v628
  %v657 = vsub.f32 %v572, %v631
  %v658 = vsub.f32 %v573, %v634
  %v659 = vsub.f32 %v574, %v638
  %v660 = vmul.f32 %v639, 1.442695
  %v661 = vpow.pop %v660
  %v662 = vmul.f32 %v640, 1.442695
  %v663 = vpow.pop %v662
  %v664 = vmul.f32 %v641, 1.442695
  %v665 = vpow.pop %v664
  %v666 = vmul.f32 %v642, 1.442695
  %v667 = vpow.pop %v666
  %v668 = vmul.f32 %v643, 1.442695
  %v669 = vpow.pop %v668
  %v670 = vmul.f32 %v644, 1.442695
  %v671 = vpow.pop %v670
  %v672 = vmul.f32 %v645, 1.442695
  %v673 = vpow.pop %v672
  %v674 = vmul.f32 %v646, 1.442695
  %v675 = vpow.pop %v674
  %v676 = vmul.f32 %v647, 1.442695
  %v677 = vpow.pop %v676
  %v678 = vmul.f32 %v648, 1.442695
  %v679 = vpow.pop %v678
  %v680 = vmul.f32 %v649, 1.442695
  %v681 = vpow.pop %v680
  %v682 = vmul.f32 %v650, 1.442695
  %v683 = vpow.pop %v682
  %v684 = vmul.f32 %v651, 1.442695
  %v685 = vpow.pop %v684
  %v686 = vmul.f32 %v652, 1.442695
  %v687 = vpow.pop %v686
  %v688 = vmul.f32 %v653, 1.442695
  %v689 = vpow.pop %v688
  %v690 = vmul.f32 %v654, 1.442695
  %v691 = vpow.pop %v690
  %v692 = vmul.f32 %v655, 1.442695
  %v693 = vpow.pop %v692
  %v694 = vmul.f32 %v656, 1.442695
  %v695 = vpow.pop %v694
  %v696 = vmul.f32 %v657, 1.442695
  %v697 = vpow.pop %v696
  %v698 = vmul.f32 %v658, 1.442695
  %v699 = vpow.pop %v698
  %v700 = vmul.f32 %v659, 1.442695
  %v701 = vpow.pop %v700
  %v702 = vsel %vm497, %v661, 0.0
  %703 = vadd.xlane.f32.xlu0 %v702
  %v704 = vpop.xlane.xlu0 %703
  %v705 = vsel %vm497, %v663, 0.0
  %706 = vadd.xlane.f32.xlu0 %v705
  %v707 = vpop.xlane.xlu0 %706
  %v708 = vsel %vm497, %v665, 0.0
  %709 = vadd.xlane.f32.xlu0 %v708
  %v710 = vpop.xlane.xlu0 %709
  %v711 = vsel %vm497, %v667, 0.0
  %712 = vadd.xlane.f32.xlu0 %v711
  %v713 = vpop.xlane.xlu0 %712
  %v714 = vsel %vm497, %v669, 0.0
  %715 = vadd.xlane.f32.xlu0 %v714
  %v716 = vpop.xlane.xlu0 %715
  %v717 = vsel %vm497, %v671, 0.0
  %718 = vadd.xlane.f32.xlu0 %v717
  %v719 = vpop.xlane.xlu0 %718
  %v720 = vsel %vm497, %v673, 0.0
  %721 = vadd.xlane.f32.xlu0 %v720
  %v722 = vpop.xlane.xlu0 %721
  %v723 = vsel %vm497, %v675, 0.0
  %724 = vadd.xlane.f32.xlu0 %v723
  %v725 = vpop.xlane.xlu0 %724
  %v726 = vsel %vm497, %v677, 0.0
  %727 = vadd.xlane.f32.xlu0 %v726
  %v728 = vpop.xlane.xlu0 %727
  %v729 = vsel %vm497, %v679, 0.0
  %730 = vadd.xlane.f32.xlu0 %v729
  %v731 = vpop.xlane.xlu0 %730
  %v732 = vsel %vm497, %v681, 0.0
  %733 = vadd.xlane.f32.xlu0 %v732
  %v734 = vpop.xlane.xlu0 %733
  %v735 = vsel %vm497, %v683, 0.0
  %736 = vadd.xlane.f32.xlu0 %v735
  %v737 = vpop.xlane.xlu0 %736
  %v738 = vsel %vm497, %v685, 0.0
  %739 = vadd.xlane.f32.xlu0 %v738
  %v740 = vpop.xlane.xlu0 %739
  %v741 = vsel %vm497, %v687, 0.0
  %742 = vadd.xlane.f32.xlu0 %v741
  %v743 = vpop.xlane.xlu0 %742
  %v744 = vsel %vm497, %v689, 0.0
  %745 = vadd.xlane.f32.xlu0 %v744
  %v746 = vpop.xlane.xlu0 %745
  %v747 = vsel %vm497, %v691, 0.0
  %748 = vadd.xlane.f32.xlu0 %v747
  %v749 = vpop.xlane.xlu0 %748
  %v750 = vsel %vm497, %v693, 0.0
  %751 = vadd.xlane.f32.xlu0 %v750
  %v752 = vpop.xlane.xlu0 %751
  %v753 = vsel %vm497, %v695, 0.0
  %754 = vadd.xlane.f32.xlu0 %v753
  %v755 = vpop.xlane.xlu0 %754
  %v756 = vsel %vm497, %v697, 0.0
  %757 = vadd.xlane.f32.xlu0 %v756
  %v758 = vpop.xlane.xlu0 %757
  %v759 = vsel %vm497, %v699, 0.0
  %760 = vadd.xlane.f32.xlu0 %v759
  %v761 = vpop.xlane.xlu0 %760
  %v762 = vsel %vm635, %v701, 0.0
  %763 = vadd.xlane.f32.xlu0 %v762
  %v764 = vpop.xlane.xlu0 %763
  %v765 = vrcp.pop %v704
  %v766 = vrcp.pop %v707
  %v767 = vrcp.pop %v710
  %v768 = vrcp.pop %v713
  %v769 = vrcp.pop %v716
  %v770 = vrcp.pop %v719
  %v771 = vrcp.pop %v722
  %v772 = vrcp.pop %v725
  %v773 = vrcp.pop %v728
  %v774 = vrcp.pop %v731
  %v775 = vrcp.pop %v734
  %v776 = vrcp.pop %v737
  %v777 = vrcp.pop %v740
  %v778 = vrcp.pop %v743
  %v779 = vrcp.pop %v746
  %v780 = vrcp.pop %v749
  %v781 = vrcp.pop %v752
  %v782 = vrcp.pop %v755
  %v783 = vrcp.pop %v758
  %v784 = vrcp.pop %v761
  %v785 = vrcp.pop %v764
  %v786 = vmul.f32 %v661, %v765
  %v787 = vmul.f32 %v663, %v766
  %v788 = vmul.f32 %v665, %v767
  %v789 = vmul.f32 %v667, %v768
  %v790 = vmul.f32 %v669, %v769
  %v791 = vmul.f32 %v671, %v770
  %v792 = vmul.f32 %v673, %v771
  %v793 = vmul.f32 %v675, %v772
  %v794 = vmul.f32 %v677, %v773
  %v795 = vmul.f32 %v679, %v774
  %v796 = vmul.f32 %v681, %v775
  %v797 = vmul.f32 %v683, %v776
  %v798 = vmul.f32 %v685, %v777
  %v799 = vmul.f32 %v687, %v778
  %v800 = vmul.f32 %v689, %v779
  %v801 = vmul.f32 %v691, %v780
  %v802 = vmul.f32 %v693, %v781
  %v803 = vmul.f32 %v695, %v782
  %v804 = vmul.f32 %v697, %v783
  %v805 = vmul.f32 %v699, %v784
  %v806 = vmul.f32 %v701, %v785
  %v807 = vld [vmem:[%s8] sm:$0xff]
  %v809 = vsel %vm497, %v786, 0
  %v812 = vsel %vm497, %v787, 0
  %v815 = vsel %vm497, %v788, 0
  %v818 = vsel %vm497, %v789, 0
  %v821 = vsel %vm497, %v790, 0
  %v824 = vsel %vm497, %v791, 0
  %v827 = vsel %vm497, %v792, 0
  %v830 = vsel %vm497, %v793, 0
  %v833 = vsel %vm497, %v794, 0
  %v836 = vsel %vm497, %v795, 0
  %v839 = vsel %vm497, %v796, 0
  %v842 = vsel %vm497, %v797, 0
  %v845 = vsel %vm497, %v798, 0
  %v848 = vsel %vm497, %v799, 0
  %v851 = vsel %vm497, %v800, 0
  %v854 = vsel %vm497, %v801, 0
  %v857 = vsel %vm497, %v802, 0
  %v860 = vsel %vm497, %v803, 0
  %v863 = vsel %vm497, %v804, 0
  %v866 = vsel %vm497, %v805, 0
  %v869 = vsel %vm497, %v806, 0
  %871 = vmatprep.subr.mxu0 0.0
  %872 = vmatpush1.msra.mxu0 %v807
  %873 = vmatprep.subr.mxu0 0.0
  %874 = vmatpush1.msra.mxu0 0.0
  %875 = vmatprep.subr.mxu0 0.0
  %876 = vmatpush1.msra.mxu0 0.0
  %877 = vmatprep.subr.mxu0 0.0
  %878 = vmatpush1.msra.mxu0 0.0
  %879 = vmatprep.subr.mxu0 0.0
  %880 = vmatpush1.msra.mxu0 0.0
  %881 = vmatprep.subr.mxu0 0.0
  %882 = vmatpush1.msra.mxu0 0.0
  %883 = vmatprep.subr.mxu0 0.0
  %884 = vmatpush1.msra.mxu0 0.0
  %885 = vmatprep.subr.mxu0 0.0
  %886 = vmatpush1.msra.mxu0 0.0
  %887 = vmatprep.subr.mxu0 0.0
  %888 = vmatpush1.msra.mxu0 0.0
  %889 = vmatprep.subr.mxu0 0.0
  %890 = vmatpush1.msra.mxu0 0.0
  %891 = vmatprep.subr.mxu0 0.0
  %892 = vmatpush1.msra.mxu0 0.0
  %893 = vmatprep.subr.mxu0 0.0
  %894 = vmatpush1.msra.mxu0 0.0
  %895 = vmatprep.subr.mxu0 0.0
  %896 = vmatpush1.msra.mxu0 0.0
  %897 = vmatprep.subr.mxu0 0.0
  %898 = vmatpush1.msra.mxu0 0.0
  %899 = vmatprep.subr.mxu0 0.0
  %900 = vmatpush1.msra.mxu0 0.0
  %901 = vmatprep.subr.mxu0 0.0
  %902 = vmatpush1.msra.mxu0 0.0
  %903 = vmatprep.subr.mxu0 0.0
  %904 = vmatpush1.msra.mxu0 0.0
  %905 = vmatprep.subr.mxu0 0.0
  %906 = vmatpush1.msra.mxu0 0.0
  %907 = vmatprep.subr.mxu0 0.0
  %908 = vmatpush1.msra.mxu0 0.0
  %909 = vmatprep.subr.mxu0 0.0
  %910 = vmatpush1.msra.mxu0 0.0
  %911 = vmatprep.subr.mxu0 0.0
  %912 = vmatpush1.msra.mxu0 0.0
  %913 = vmatprep.subr.mxu0 0.0
  %914 = vmatpush1.msra.mxu0 0.0
  %915 = vmatprep.subr.mxu0 0.0
  %916 = vmatpush1.msra.mxu0 0.0
  %917 = vmatprep.subr.mxu0 0.0
  %918 = vmatpush1.msra.mxu0 0.0
  %919 = vmatprep.subr.mxu0 0.0
  %920 = vmatpush1.msra.mxu0 0.0
  %921 = vmatprep.subr.mxu0 0.0
  %922 = vmatpush1.msra.mxu0 0.0
  %923 = vmatprep.subr.mxu0 0.0
  %924 = vmatpush1.msra.mxu0 0.0
  %925 = vmatprep.subr.mxu0 0.0
  %926 = vmatpush1.msra.mxu0 0.0
  %927 = vmatprep.subr.mxu0 0.0
  %928 = vmatpush1.msra.mxu0 0.0
  %929 = vmatprep.subr.mxu0 0.0
  %930 = vmatpush1.msra.mxu0 0.0
  %931 = vmatprep.subr.mxu0 0.0
  %932 = vmatpush1.msra.mxu0 0.0
  %933 = vmatprep.subr.mxu0 0.0
  %934 = vmatpush1.msra.mxu0 0.0
  %935 = vmatprep.mubr.f32.mxu0 0.0
  %936 = vmatmul.mubr.f32.gmra.mrb[0].mxu0 %v809
  %v937 = vpop.f32.mrb[0].mxu0
  %v938 = vadd.f32 0.0, %v937
  %v939 = vpop.f32.mrb[0].mxu0
  %940 = vmatprep.mubr.f32.mxu0 0.0
  %941 = vmatmul.mubr.f32.gmra.mrb[0].mxu0 %v812
  %v942 = vpop.f32.mrb[0].mxu0
  %v943 = vadd.f32 0.0, %v942
  %v944 = vpop.f32.mrb[0].mxu0
  %945 = vmatprep.mubr.f32.mxu0 0.0
  %946 = vmatmul.mubr.f32.gmra.mrb[0].mxu0 %v815
  %v947 = vpop.f32.mrb[0].mxu0
  %v948 = vadd.f32 0.0, %v947
  %v949 = vpop.f32.mrb[0].mxu0
  %950 = vmatprep.mubr.f32.mxu0 0.0
  %951 = vmatmul.mubr.f32.gmra.mrb[0].mxu0 %v818
  %v952 = vpop.f32.mrb[0].mxu0
  %v953 = vadd.f32 0.0, %v952
  %v954 = vpop.f32.mrb[0].mxu0
  %955 = vmatprep.mubr.f32.mxu0 0.0
  %956 = vmatmul.mubr.f32.gmra.mrb[0].mxu0 %v821
  %v957 = vpop.f32.mrb[0].mxu0
  %v958 = vadd.f32 0.0, %v957
  %v959 = vpop.f32.mrb[0].mxu0
  %960 = vmatprep.mubr.f32.mxu0 0.0
  %961 = vmatmul.mubr.f32.gmra.mrb[0].mxu0 %v824
  %v962 = vpop.f32.mrb[0].mxu0
  %v963 = vadd.f32 0.0, %v962
  %v964 = vpop.f32.mrb[0].mxu0
  %965 = vmatprep.mubr.f32.mxu0 0.0
  %966 = vmatmul.mubr.f32.gmra.mrb[0].mxu0 %v827
  %v967 = vpop.f32.mrb[0].mxu0
  %v968 = vadd.f32 0.0, %v967
  %v969 = vpop.f32.mrb[0].mxu0
  %970 = vmatprep.mubr.f32.mxu0 0.0
  %971 = vmatmul.mubr.f32.gmra.mrb[0].mxu0 %v830
  %v972 = vpop.f32.mrb[0].mxu0
  %v973 = vadd.f32 0.0, %v972
  %v974 = vpop.f32.mrb[0].mxu0
  %975 = vmatprep.mubr.f32.mxu0 0.0
  %976 = vmatmul.mubr.f32.gmra.mrb[0].mxu0 %v833
  %v977 = vpop.f32.mrb[0].mxu0
  %v978 = vadd.f32 0.0, %v977
  %v979 = vpop.f32.mrb[0].mxu0
  %980 = vmatprep.mubr.f32.mxu0 0.0
  %981 = vmatmul.mubr.f32.gmra.mrb[0].mxu0 %v836
  %v982 = vpop.f32.mrb[0].mxu0
  %v983 = vadd.f32 0.0, %v982
  %v984 = vpop.f32.mrb[0].mxu0
  %985 = vmatprep.mubr.f32.mxu0 0.0
  %986 = vmatmul.mubr.f32.gmra.mrb[0].mxu0 %v839
  %v987 = vpop.f32.mrb[0].mxu0
  %v988 = vadd.f32 0.0, %v987
  %v989 = vpop.f32.mrb[0].mxu0
  %990 = vmatprep.mubr.f32.mxu0 0.0
  %991 = vmatmul.mubr.f32.gmra.mrb[0].mxu0 %v842
  %v992 = vpop.f32.mrb[0].mxu0
  %v993 = vadd.f32 0.0, %v992
  %v994 = vpop.f32.mrb[0].mxu0
  %995 = vmatprep.mubr.f32.mxu0 0.0
  %996 = vmatmul.mubr.f32.gmra.mrb[0].mxu0 %v845
  %v997 = vpop.f32.mrb[0].mxu0
  %v998 = vadd.f32 0.0, %v997
  %v999 = vpop.f32.mrb[0].mxu0
  %1000 = vmatprep.mubr.f32.mxu0 0.0
  %1001 = vmatmul.mubr.f32.gmra.mrb[0].mxu0 %v848
  %v1002 = vpop.f32.mrb[0].mxu0
  %v1003 = vadd.f32 0.0, %v1002
  %v1004 = vpop.f32.mrb[0].mxu0
  %1005 = vmatprep.mubr.f32.mxu0 0.0
  %1006 = vmatmul.mubr.f32.gmra.mrb[0].mxu0 %v851
  %v1007 = vpop.f32.mrb[0].mxu0
  %v1008 = vadd.f32 0.0, %v1007
  %v1009 = vpop.f32.mrb[0].mxu0
  %1010 = vmatprep.mubr.f32.mxu0 0.0
  %1011 = vmatmul.mubr.f32.gmra.mrb[0].mxu0 %v854
  %v1012 = vpop.f32.mrb[0].mxu0
  %v1013 = vadd.f32 0.0, %v1012
  %v1014 = vpop.f32.mrb[0].mxu0
  %1015 = vmatprep.mubr.f32.mxu0 0.0
  %1016 = vmatmul.mubr.f32.gmra.mrb[0].mxu0 %v857
  %v1017 = vpop.f32.mrb[0].mxu0
  %v1018 = vadd.f32 0.0, %v1017
  %v1019 = vpop.f32.mrb[0].mxu0
  %1020 = vmatprep.mubr.f32.mxu0 0.0
  %1021 = vmatmul.mubr.f32.gmra.mrb[0].mxu0 %v860
  %v1022 = vpop.f32.mrb[0].mxu0
  %v1023 = vadd.f32 0.0, %v1022
  %v1024 = vpop.f32.mrb[0].mxu0
  %1025 = vmatprep.mubr.f32.mxu0 0.0
  %1026 = vmatmul.mubr.f32.gmra.mrb[0].mxu0 %v863
  %v1027 = vpop.f32.mrb[0].mxu0
  %v1028 = vadd.f32 0.0, %v1027
  %v1029 = vpop.f32.mrb[0].mxu0
  %1030 = vmatprep.mubr.f32.mxu0 0.0
  %1031 = vmatmul.mubr.f32.gmra.mrb[0].mxu0 %v866
  %v1032 = vpop.f32.mrb[0].mxu0
  %v1033 = vadd.f32 0.0, %v1032
  %v1034 = vpop.f32.mrb[0].mxu0
  %1035 = vmatprep.mubr.f32.mxu0 0.0
  %1036 = vmatmul.mubr.f32.gmra.mrb[0].mxu0 %v869
  %v1037 = vpop.f32.mrb[0].mxu0
  %v1038 = vadd.f32 0.0, %v1037
  %v1039 = vpop.f32.mrb[0].mxu0
  %1040 = vdwg.mxu0
  %v1041 = vld [vmem:[#allocation5] sm:$0xff]
  %v1042 = vld [vmem:[#allocation5 + $0x8] sm:$0xff]
  %v1043 = vld [vmem:[#allocation5 + $0x10] sm:$0xff]
  %v1044 = vld [vmem:[#allocation5 + $0x18] sm:$0xff]
  %v1045 = vld [vmem:[#allocation5 + $0x20] sm:$0xff]
  %v1046 = vld [vmem:[#allocation5 + $0x28] sm:$0xff]
  %v1047 = vld [vmem:[#allocation5 + $0x30] sm:$0xff]
  %v1048 = vld [vmem:[#allocation5 + $0x38] sm:$0xff]
  %v1049 = vld [vmem:[#allocation5 + $0x40] sm:$0xff]
  %v1050 = vld [vmem:[#allocation5 + $0x48] sm:$0xff]
  %v1051 = vld [vmem:[#allocation5 + $0x50] sm:$0xff]
  %v1052 = vld [vmem:[#allocation5 + $0x58] sm:$0xff]
  %v1053 = vld [vmem:[#allocation5 + $0x60] sm:$0xff]
  %v1054 = vld [vmem:[#allocation5 + $0x68] sm:$0xff]
  %v1055 = vld [vmem:[#allocation5 + $0x70] sm:$0xff]
  %v1056 = vld [vmem:[#allocation5 + $0x78] sm:$0xff]
  %v1057 = vld [vmem:[#allocation5 + $0x80] sm:$0xff]
  %v1058 = vld [vmem:[#allocation5 + $0x88] sm:$0xff]
  %v1059 = vld [vmem:[#allocation5 + $0x90] sm:$0xff]
  %v1060 = vld [vmem:[#allocation5 + $0x98] sm:$0xff]
  %v1061 = vld [vmem:[#allocation5 + $0xa0] sm:$0x3]
  %v1062 = vmul.f32 %v1041, %v938
  %v1063 = vmul.f32 %v1042, %v943
  %v1064 = vmul.f32 %v1043, %v948
  %v1065 = vmul.f32 %v1044, %v953
  %v1066 = vmul.f32 %v1045, %v958
  %v1067 = vmul.f32 %v1046, %v963
  %v1068 = vmul.f32 %v1047, %v968
  %v1069 = vmul.f32 %v1048, %v973
  %v1070 = vmul.f32 %v1049, %v978
  %v1071 = vmul.f32 %v1050, %v983
  %v1072 = vmul.f32 %v1051, %v988
  %v1073 = vmul.f32 %v1052, %v993
  %v1074 = vmul.f32 %v1053, %v998
  %v1075 = vmul.f32 %v1054, %v1003
  %v1076 = vmul.f32 %v1055, %v1008
  %v1077 = vmul.f32 %v1056, %v1013
  %v1078 = vmul.f32 %v1057, %v1018
  %v1079 = vmul.f32 %v1058, %v1023
  %v1080 = vmul.f32 %v1059, %v1028
  %v1081 = vmul.f32 %v1060, %v1033
  %v1082 = vmul.f32 %v1061, %v1038
  %1083 = vst [vmem:[#allocation5] sm:$0xff] %v1062
  %1084 = vst [vmem:[#allocation5 + $0x8] sm:$0xff] %v1063
  %1085 = vst [vmem:[#allocation5 + $0x10] sm:$0xff] %v1064
  %1086 = vst [vmem:[#allocation5 + $0x18] sm:$0xff] %v1065
  %1087 = vst [vmem:[#allocation5 + $0x20] sm:$0xff] %v1066
  %1088 = vst [vmem:[#allocation5 + $0x28] sm:$0xff] %v1067
  %1089 = vst [vmem:[#allocation5 + $0x30] sm:$0xff] %v1068
  %1090 = vst [vmem:[#allocation5 + $0x38] sm:$0xff] %v1069
  %1091 = vst [vmem:[#allocation5 + $0x40] sm:$0xff] %v1070
  %1092 = vst [vmem:[#allocation5 + $0x48] sm:$0xff] %v1071
  %1093 = vst [vmem:[#allocation5 + $0x50] sm:$0xff] %v1072
  %1094 = vst [vmem:[#allocation5 + $0x58] sm:$0xff] %v1073
  %1095 = vst [vmem:[#allocation5 + $0x60] sm:$0xff] %v1074
  %1096 = vst [vmem:[#allocation5 + $0x68] sm:$0xff] %v1075
  %1097 = vst [vmem:[#allocation5 + $0x70] sm:$0xff] %v1076
  %1098 = vst [vmem:[#allocation5 + $0x78] sm:$0xff] %v1077
  %1099 = vst [vmem:[#allocation5 + $0x80] sm:$0xff] %v1078
  %1100 = vst [vmem:[#allocation5 + $0x88] sm:$0xff] %v1079
  %1101 = vst [vmem:[#allocation5 + $0x90] sm:$0xff] %v1080
  %1102 = vst [vmem:[#allocation5 + $0x98] sm:$0xff] %v1081
  %1103 = vst [vmem:[#allocation5 + $0xa0] sm:$0x3] %v1082
  %1104 = vst [vmem:[#allocation6] sm:$0xff] 0.0
  %1105 = vst [vmem:[#allocation6 + $0x8] sm:$0xff] 0.0
  %1106 = vst [vmem:[#allocation6 + $0x10] sm:$0xff] 0.0
  %1107 = vst [vmem:[#allocation6 + $0x18] sm:$0xff] 0.0
  %1108 = vst [vmem:[#allocation6 + $0x20] sm:$0xff] 0.0
  %1109 = vst [vmem:[#allocation6 + $0x28] sm:$0xff] 0.0
  %1110 = vst [vmem:[#allocation6 + $0x30] sm:$0xff] 0.0
  %1111 = vst [vmem:[#allocation6 + $0x38] sm:$0xff] 0.0
  loop: start=0, step=1, limit=162
  $region61: #{tpu_custom_call.1} parent=0 // loop_pre_header
    _
  $region62: #{tpu_custom_call.1} parent=0 // loop_header
    %s1113 = sphi 0, %s1117
    %p1114 = scmp.ge.s32.totalorder %s1113, 162
  $region63: #{tpu_custom_call.1} parent=0 // loop_header_branch
    %1116 = sbr.rel (%p1114) target = $region67
  $region64: #{tpu_custom_call.1} parent=0 // loop_body
    %s1118 = sld [smem:[#allocation9 + %s1113]]
    %s1119 = scalar_lea.vmem [#allocation6], %s1118
    %v1120 = vld [vmem:[%s1119] sm:$0x1]
    %s1121 = scalar_lea.vmem [#allocation5], %s1113
    %v1122 = vld [vmem:[%s1121] sm:$0x1]
    %v1123 = vadd.f32 %v1120, %v1122
    %1124 = vst [vmem:[%s1119] sm:$0x1] %v1123
  $region65: #{tpu_custom_call.1} parent=0 // loop_footer
    %s1117 = sadd.s32 1, %s1113
  $region66: #{tpu_custom_call.1} parent=0 // loop_footer_branch
    %1112 = sbr.rel target = $region62
  $region67: #{tpu_custom_call.1} parent=0 // loop_exit
    _
  %v1125 = vld [vmem:[#allocation6] sm:$0xff]
  %v1126 = vld [vmem:[#allocation6 + $0x8] sm:$0xff]
  %v1127 = vld [vmem:[#allocation6 + $0x10] sm:$0xff]
  %v1128 = vld [vmem:[#allocation6 + $0x18] sm:$0xff]
  %v1129 = vld [vmem:[#allocation6 + $0x20] sm:$0xff]
  %v1130 = vld [vmem:[#allocation6 + $0x28] sm:$0xff]
  %v1131 = vld [vmem:[#allocation6 + $0x30] sm:$0xff]
  %v1132 = vld [vmem:[#allocation6 + $0x38] sm:$0xff]
  %v1133 = vld [vmem:[%s9] sm:$0xff]
  %v1134 = vld [vmem:[%s9 + $0x8] sm:$0xff]
  %v1135 = vld [vmem:[%s9 + $0x10] sm:$0xff]
  %v1136 = vld [vmem:[%s9 + $0x18] sm:$0xff]
  %v1137 = vld [vmem:[%s9 + $0x20] sm:$0xff]
  %v1138 = vld [vmem:[%s9 + $0x28] sm:$0xff]
  %v1139 = vld [vmem:[%s9 + $0x30] sm:$0xff]
  %v1140 = vld [vmem:[%s9 + $0x38] sm:$0xff]
  %v1141 = vld [vmem:[%s9 + $0x40] sm:$0xff]
  %v1142 = vld [vmem:[%s9 + $0x48] sm:$0xff]
  %v1143 = vld [vmem:[%s9 + $0x50] sm:$0xff]
  %v1144 = vld [vmem:[%s9 + $0x58] sm:$0xff]
  %v1145 = vld [vmem:[%s9 + $0x60] sm:$0xff]
  %v1146 = vld [vmem:[%s9 + $0x68] sm:$0xff]
  %v1147 = vld [vmem:[%s9 + $0x70] sm:$0xff]
  %v1148 = vld [vmem:[%s9 + $0x78] sm:$0xff]
  %1149 = vmatprep.subr.mxu0 0.0
  %1150 = vmatpush1.msra.mxu0 %v1133
  %1151 = vmatprep.subr.mxu0 0.0
  %1152 = vmatpush1.msra.mxu0 %v1134
  %1153 = vmatprep.subr.mxu0 0.0
  %1154 = vmatpush1.msra.mxu0 %v1135
  %1155 = vmatprep.subr.mxu0 0.0
  %1156 = vmatpush1.msra.mxu0 %v1136
  %1157 = vmatprep.subr.mxu0 0.0
  %1158 = vmatpush1.msra.mxu0 %v1137
  %1159 = vmatprep.subr.mxu0 0.0
  %1160 = vmatpush1.msra.mxu0 %v1138
  %1161 = vmatprep.subr.mxu0 0.0
  %1162 = vmatpush1.msra.mxu0 %v1139
  %1163 = vmatprep.subr.mxu0 0.0
  %1164 = vmatpush1.msra.mxu0 %v1140
  %1165 = vmatprep.subr.mxu0 0.0
  %1166 = vmatpush1.msra.mxu0 %v1141
  %1167 = vmatprep.subr.mxu0 0.0
  %1168 = vmatpush1.msra.mxu0 %v1142
  %1169 = vmatprep.subr.mxu0 0.0
  %1170 = vmatpush1.msra.mxu0 %v1143
  %1171 = vmatprep.subr.mxu0 0.0
  %1172 = vmatpush1.msra.mxu0 %v1144
  %1173 = vmatprep.subr.mxu0 0.0
  %1174 = vmatpush1.msra.mxu0 %v1145
  %1175 = vmatprep.subr.mxu0 0.0
  %1176 = vmatpush1.msra.mxu0 %v1146
  %1177 = vmatprep.subr.mxu0 0.0
  %1178 = vmatpush1.msra.mxu0 %v1147
  %1179 = vmatprep.subr.mxu0 0.0
  %1180 = vmatpush1.msra.mxu0 %v1148
  %1181 = vmatprep.subr.mxu0 0.0
  %1182 = vmatpush1.msra.mxu0 0.0
  %1183 = vmatprep.subr.mxu0 0.0
  %1184 = vmatpush1.msra.mxu0 0.0
  %1185 = vmatprep.subr.mxu0 0.0
  %1186 = vmatpush1.msra.mxu0 0.0
  %1187 = vmatprep.subr.mxu0 0.0
  %1188 = vmatpush1.msra.mxu0 0.0
  %1189 = vmatprep.subr.mxu0 0.0
  %1190 = vmatpush1.msra.mxu0 0.0
  %1191 = vmatprep.subr.mxu0 0.0
  %1192 = vmatpush1.msra.mxu0 0.0
  %1193 = vmatprep.subr.mxu0 0.0
  %1194 = vmatpush1.msra.mxu0 0.0
  %1195 = vmatprep.subr.mxu0 0.0
  %1196 = vmatpush1.msra.mxu0 0.0
  %1197 = vmatprep.subr.mxu0 0.0
  %1198 = vmatpush1.msra.mxu0 0.0
  %1199 = vmatprep.subr.mxu0 0.0
  %1200 = vmatpush1.msra.mxu0 0.0
  %1201 = vmatprep.subr.mxu0 0.0
  %1202 = vmatpush1.msra.mxu0 0.0
  %1203 = vmatprep.subr.mxu0 0.0
  %1204 = vmatpush1.msra.mxu0 0.0
  %1205 = vmatprep.subr.mxu0 0.0
  %1206 = vmatpush1.msra.mxu0 0.0
  %1207 = vmatprep.subr.mxu0 0.0
  %1208 = vmatpush1.msra.mxu0 0.0
  %1209 = vmatprep.subr.mxu0 0.0
  %1210 = vmatpush1.msra.mxu0 0.0
  %1211 = vmatprep.subr.mxu0 0.0
  %1212 = vmatpush1.msra.mxu0 0.0
  %1213 = vmatprep.mubr.f32.mxu0 0.0
  %1214 = vmatmul.mubr.f32.gmra.mrb[0].mxu0 %v1125
  %v1215 = vpop.f32.mrb[0].mxu0
  %v1216 = vadd.f32 0.0, %v1215
  %v1217 = vpop.f32.mrb[0].mxu0
  %1218 = vmatprep.mubr.f32.mxu0 0.0
  %1219 = vmatmul.mubr.f32.gmra.mrb[0].mxu0 %v1126
  %v1220 = vpop.f32.mrb[0].mxu0
  %v1221 = vadd.f32 0.0, %v1220
  %v1222 = vpop.f32.mrb[0].mxu0
  %1223 = vmatprep.mubr.f32.mxu0 0.0
  %1224 = vmatmul.mubr.f32.gmra.mrb[0].mxu0 %v1127
  %v1225 = vpop.f32.mrb[0].mxu0
  %v1226 = vadd.f32 0.0, %v1225
  %v1227 = vpop.f32.mrb[0].mxu0
  %1228 = vmatprep.mubr.f32.mxu0 0.0
  %1229 = vmatmul.mubr.f32.gmra.mrb[0].mxu0 %v1128
  %v1230 = vpop.f32.mrb[0].mxu0
  %v1231 = vadd.f32 0.0, %v1230
  %v1232 = vpop.f32.mrb[0].mxu0
  %1233 = vmatprep.mubr.f32.mxu0 0.0
  %1234 = vmatmul.mubr.f32.gmra.mrb[0].mxu0 %v1129
  %v1235 = vpop.f32.mrb[0].mxu0
  %v1236 = vadd.f32 0.0, %v1235
  %v1237 = vpop.f32.mrb[0].mxu0
  %1238 = vmatprep.mubr.f32.mxu0 0.0
  %1239 = vmatmul.mubr.f32.gmra.mrb[0].mxu0 %v1130
  %v1240 = vpop.f32.mrb[0].mxu0
  %v1241 = vadd.f32 0.0, %v1240
  %v1242 = vpop.f32.mrb[0].mxu0
  %1243 = vmatprep.mubr.f32.mxu0 0.0
  %1244 = vmatmul.mubr.f32.gmra.mrb[0].mxu0 %v1131
  %v1245 = vpop.f32.mrb[0].mxu0
  %v1246 = vadd.f32 0.0, %v1245
  %v1247 = vpop.f32.mrb[0].mxu0
  %1248 = vmatprep.mubr.f32.mxu0 0.0
  %1249 = vmatmul.mubr.f32.gmra.mrb[0].mxu0 %v1132
  %v1250 = vpop.f32.mrb[0].mxu0
  %v1251 = vadd.f32 0.0, %v1250
  %v1252 = vpop.f32.mrb[0].mxu0
  %1253 = vdwg.mxu0
  %v1254 = vld [vmem:[%s10] sm:$0xff]
  %v1255 = vld [vmem:[%s10 + $0x8] sm:$0xff]
  %v1256 = vld [vmem:[%s10 + $0x10] sm:$0xff]
  %v1257 = vld [vmem:[%s10 + $0x18] sm:$0xff]
  %v1258 = vld [vmem:[%s10 + $0x20] sm:$0xff]
  %v1259 = vld [vmem:[%s10 + $0x28] sm:$0xff]
  %v1260 = vld [vmem:[%s10 + $0x30] sm:$0xff]
  %v1261 = vld [vmem:[%s10 + $0x38] sm:$0xff]
  %1263 = vset.pattern.permute.xlu0 0
  %1264 = vperm.xlu0 %1263, %v1254
  %v1265 = vpop.permute.xlu0 %1264
  %1268 = vset.pattern.permute.xlu0 0
  %1269 = vperm.xlu0 %1268, %v1255
  %v1270 = vpop.permute.xlu0 %1269
  %1273 = vset.pattern.permute.xlu0 0
  %1274 = vperm.xlu0 %1273, %v1256
  %v1275 = vpop.permute.xlu0 %1274
  %1278 = vset.pattern.permute.xlu0 0
  %1279 = vperm.xlu0 %1278, %v1257
  %v1280 = vpop.permute.xlu0 %1279
  %1283 = vset.pattern.permute.xlu0 0
  %1284 = vperm.xlu0 %1283, %v1258
  %v1285 = vpop.permute.xlu0 %1284
  %1288 = vset.pattern.permute.xlu0 0
  %1289 = vperm.xlu0 %1288, %v1259
  %v1290 = vpop.permute.xlu0 %1289
  %1293 = vset.pattern.permute.xlu0 0
  %1294 = vperm.xlu0 %1293, %v1260
  %v1295 = vpop.permute.xlu0 %1294
  %1298 = vset.pattern.permute.xlu0 0
  %1299 = vperm.xlu0 %1298, %v1261
  %v1300 = vpop.permute.xlu0 %1299
  %v1302 = vmul.f32 %v1216, %v1265
  %v1303 = vmul.f32 %v1221, %v1270
  %v1304 = vmul.f32 %v1226, %v1275
  %v1305 = vmul.f32 %v1231, %v1280
  %v1306 = vmul.f32 %v1236, %v1285
  %v1307 = vmul.f32 %v1241, %v1290
  %v1308 = vmul.f32 %v1246, %v1295
  %v1309 = vmul.f32 %v1251, %v1300
  %v1310 = vld [vmem:[%s11] sm:$0x1]
  %v1311 = vld [vmem:[%s12] sm:$0x1]
  %v1312 = vsel %vm200, %v1302, 0.0
  %v1313 = vsel %vm200, %v1303, 0.0
  %v1314 = vadd.f32 %v1312, %v1313
  %v1315 = vsel %vm200, %v1304, 0.0
  %v1316 = vadd.f32 %v1314, %v1315
  %v1317 = vsel %vm200, %v1305, 0.0
  %v1318 = vadd.f32 %v1316, %v1317
  %v1319 = vsel %vm200, %v1306, 0.0
  %v1320 = vadd.f32 %v1318, %v1319
  %v1321 = vsel %vm200, %v1307, 0.0
  %v1322 = vadd.f32 %v1320, %v1321
  %v1323 = vsel %vm200, %v1308, 0.0
  %v1324 = vadd.f32 %v1322, %v1323
  %v1325 = vsel %vm200, %v1309, 0.0
  %v1326 = vadd.f32 %v1324, %v1325
  %v1327 = vrot.slane %v1326, 4
  %v1328 = vadd.f32 %v1326, %v1327
  %v1329 = vrot.slane %v1328, 2
  %v1330 = vadd.f32 %v1328, %v1329
  %v1331 = vrot.slane %v1330, 1
  %v1332 = vadd.f32 %v1330, %v1331
  %v1333 = vmul.f32 %v1332, %v222
  %v1334 = vsub.f32 %v1302, %v1333
  %v1335 = vsub.f32 %v1303, %v1333
  %v1336 = vsub.f32 %v1304, %v1333
  %v1337 = vsub.f32 %v1305, %v1333
  %v1338 = vsub.f32 %v1306, %v1333
  %v1339 = vsub.f32 %v1307, %v1333
  %v1340 = vsub.f32 %v1308, %v1333
  %v1341 = vsub.f32 %v1309, %v1333
  %v1342 = vmul.f32 %v1334, %v1334
  %v1343 = vmul.f32 %v1335, %v1335
  %v1344 = vmul.f32 %v1336, %v1336
  %v1345 = vmul.f32 %v1337, %v1337
  %v1346 = vmul.f32 %v1338, %v1338
  %v1347 = vmul.f32 %v1339, %v1339
  %v1348 = vmul.f32 %v1340, %v1340
  %v1349 = vmul.f32 %v1341, %v1341
  %v1350 = vsel %vm200, %v1342, 0.0
  %v1351 = vsel %vm200, %v1343, 0.0
  %v1352 = vadd.f32 %v1350, %v1351
  %v1353 = vsel %vm200, %v1344, 0.0
  %v1354 = vadd.f32 %v1352, %v1353
  %v1355 = vsel %vm200, %v1345, 0.0
  %v1356 = vadd.f32 %v1354, %v1355
  %v1357 = vsel %vm200, %v1346, 0.0
  %v1358 = vadd.f32 %v1356, %v1357
  %v1359 = vsel %vm200, %v1347, 0.0
  %v1360 = vadd.f32 %v1358, %v1359
  %v1361 = vsel %vm200, %v1348, 0.0
  %v1362 = vadd.f32 %v1360, %v1361
  %v1363 = vsel %vm200, %v1349, 0.0
  %v1364 = vadd.f32 %v1362, %v1363
  %v1365 = vrot.slane %v1364, 4
  %v1366 = vadd.f32 %v1364, %v1365
  %v1367 = vrot.slane %v1366, 2
  %v1368 = vadd.f32 %v1366, %v1367
  %v1369 = vrot.slane %v1368, 1
  %v1370 = vadd.f32 %v1368, %v1369
  %v1371 = vmul.f32 %v1370, %v222
  %v1372 = vadd.f32 %v1371, 1e-05
  %v1373 = vrsqrt.pop %v1372
  %v1374 = vmul.f32 %v1334, %v1373
  %v1375 = vmul.f32 %v1335, %v1373
  %v1376 = vmul.f32 %v1336, %v1373
  %v1377 = vmul.f32 %v1337, %v1373
  %v1378 = vmul.f32 %v1338, %v1373
  %v1379 = vmul.f32 %v1339, %v1373
  %v1380 = vmul.f32 %v1340, %v1373
  %v1381 = vmul.f32 %v1341, %v1373
  %v1383 = vlaneseq
  %v1384 = vshrl.u32 %v1383, 7
  %v1385 = vsub.s32 0, %v1384
  %v1386 = vrot.slane %v1310, %v1385
  %v1388 = vmul.f32 %v1374, %v1386
  %v1389 = vmul.f32 %v1375, %v1386
  %v1390 = vmul.f32 %v1376, %v1386
  %v1391 = vmul.f32 %v1377, %v1386
  %v1392 = vmul.f32 %v1378, %v1386
  %v1393 = vmul.f32 %v1379, %v1386
  %v1394 = vmul.f32 %v1380, %v1386
  %v1395 = vmul.f32 %v1381, %v1386
  %v1397 = vlaneseq
  %v1398 = vshrl.u32 %v1397, 7
  %v1399 = vsub.s32 0, %v1398
  %v1400 = vrot.slane %v1311, %v1399
  %v1402 = vadd.f32 %v1388, %v1400
  %v1403 = vadd.f32 %v1389, %v1400
  %v1404 = vadd.f32 %v1390, %v1400
  %v1405 = vadd.f32 %v1391, %v1400
  %v1406 = vadd.f32 %v1392, %v1400
  %v1407 = vadd.f32 %v1393, %v1400
  %v1408 = vadd.f32 %v1394, %v1400
  %v1409 = vadd.f32 %v1395, %v1400
  %vm1410 = vcmp.gt.f32.partialorder %v1402, 0.0
  %vm1411 = vcmp.gt.f32.partialorder %v1403, 0.0
  %vm1412 = vcmp.gt.f32.partialorder %v1404, 0.0
  %vm1413 = vcmp.gt.f32.partialorder %v1405, 0.0
  %vm1414 = vcmp.gt.f32.partialorder %v1406, 0.0
  %vm1415 = vcmp.gt.f32.partialorder %v1407, 0.0
  %vm1416 = vcmp.gt.f32.partialorder %v1408, 0.0
  %vm1417 = vcmp.gt.f32.partialorder %v1409, 0.0
  %v1418 = vmin.f32 %v1402, 0.0
  %v1419 = vmin.f32 %v1403, 0.0
  %v1420 = vmin.f32 %v1404, 0.0
  %v1421 = vmin.f32 %v1405, 0.0
  %v1422 = vmin.f32 %v1406, 0.0
  %v1423 = vmin.f32 %v1407, 0.0
  %v1424 = vmin.f32 %v1408, 0.0
  %v1425 = vmin.f32 %v1409, 0.0
  %v1426 = vmul.f32 %v1418, 1.442695
  %v1427 = vpow.pop %v1426
  %v1428 = vmul.f32 %v1419, 1.442695
  %v1429 = vpow.pop %v1428
  %v1430 = vmul.f32 %v1420, 1.442695
  %v1431 = vpow.pop %v1430
  %v1432 = vmul.f32 %v1421, 1.442695
  %v1433 = vpow.pop %v1432
  %v1434 = vmul.f32 %v1422, 1.442695
  %v1435 = vpow.pop %v1434
  %v1436 = vmul.f32 %v1423, 1.442695
  %v1437 = vpow.pop %v1436
  %v1438 = vmul.f32 %v1424, 1.442695
  %v1439 = vpow.pop %v1438
  %v1440 = vmul.f32 %v1425, 1.442695
  %v1441 = vpow.pop %v1440
  %v1442 = vsub.f32 %v1427, 1.0
  %v1443 = vsub.f32 %v1429, 1.0
  %v1444 = vsub.f32 %v1431, 1.0
  %v1445 = vsub.f32 %v1433, 1.0
  %v1446 = vsub.f32 %v1435, 1.0
  %v1447 = vsub.f32 %v1437, 1.0
  %v1448 = vsub.f32 %v1439, 1.0
  %v1449 = vsub.f32 %v1441, 1.0
  %v1450 = vsel %vm1410, %v1402, %v1442
  %v1451 = vsel %vm1411, %v1403, %v1443
  %v1452 = vsel %vm1412, %v1404, %v1444
  %v1453 = vsel %vm1413, %v1405, %v1445
  %v1454 = vsel %vm1414, %v1406, %v1446
  %v1455 = vsel %vm1415, %v1407, %v1447
  %v1456 = vsel %vm1416, %v1408, %v1448
  %v1457 = vsel %vm1417, %v1409, %v1449
  %v1458 = vld [vmem:[%s13] sm:$0xff]
  %v1459 = vld [vmem:[%s13 + $0x8] sm:$0xff]
  %v1460 = vld [vmem:[%s14] sm:$0x1]
  %v1462 = vlaneseq
  %v1463 = vshrl.u32 %v1462, 7
  %v1464 = vsub.s32 0, %v1463
  %v1465 = vrot.slane %v1460, %v1464
  %v1468 = vsel %vm200, %v1450, 0
  %v1471 = vsel %vm200, %v1451, 0
  %v1474 = vsel %vm200, %v1452, 0
  %v1477 = vsel %vm200, %v1453, 0
  %v1480 = vsel %vm200, %v1454, 0
  %v1483 = vsel %vm200, %v1455, 0
  %v1486 = vsel %vm200, %v1456, 0
  %v1489 = vsel %vm200, %v1457, 0
  %1491 = vmatprep.subr.mxu0 0.0
  %1492 = vmatpush1.msra.mxu0 %v1458
  %1493 = vmatprep.subr.mxu0 0.0
  %1494 = vmatpush1.msra.mxu0 %v1459
  %1495 = vmatprep.subr.mxu0 0.0
  %1496 = vmatpush1.msra.mxu0 0.0
  %1497 = vmatprep.subr.mxu0 0.0
  %1498 = vmatpush1.msra.mxu0 0.0
  %1499 = vmatprep.subr.mxu0 0.0
  %1500 = vmatpush1.msra.mxu0 0.0
  %1501 = vmatprep.subr.mxu0 0.0
  %1502 = vmatpush1.msra.mxu0 0.0
  %1503 = vmatprep.subr.mxu0 0.0
  %1504 = vmatpush1.msra.mxu0 0.0
  %1505 = vmatprep.subr.mxu0 0.0
  %1506 = vmatpush1.msra.mxu0 0.0
  %1507 = vmatprep.subr.mxu0 0.0
  %1508 = vmatpush1.msra.mxu0 0.0
  %1509 = vmatprep.subr.mxu0 0.0
  %1510 = vmatpush1.msra.mxu0 0.0
  %1511 = vmatprep.subr.mxu0 0.0
  %1512 = vmatpush1.msra.mxu0 0.0
  %1513 = vmatprep.subr.mxu0 0.0
  %1514 = vmatpush1.msra.mxu0 0.0
  %1515 = vmatprep.subr.mxu0 0.0
  %1516 = vmatpush1.msra.mxu0 0.0
  %1517 = vmatprep.subr.mxu0 0.0
  %1518 = vmatpush1.msra.mxu0 0.0
  %1519 = vmatprep.subr.mxu0 0.0
  %1520 = vmatpush1.msra.mxu0 0.0
  %1521 = vmatprep.subr.mxu0 0.0
  %1522 = vmatpush1.msra.mxu0 0.0
  %1523 = vmatprep.subr.mxu0 0.0
  %1524 = vmatpush1.msra.mxu0 0.0
  %1525 = vmatprep.subr.mxu0 0.0
  %1526 = vmatpush1.msra.mxu0 0.0
  %1527 = vmatprep.subr.mxu0 0.0
  %1528 = vmatpush1.msra.mxu0 0.0
  %1529 = vmatprep.subr.mxu0 0.0
  %1530 = vmatpush1.msra.mxu0 0.0
  %1531 = vmatprep.subr.mxu0 0.0
  %1532 = vmatpush1.msra.mxu0 0.0
  %1533 = vmatprep.subr.mxu0 0.0
  %1534 = vmatpush1.msra.mxu0 0.0
  %1535 = vmatprep.subr.mxu0 0.0
  %1536 = vmatpush1.msra.mxu0 0.0
  %1537 = vmatprep.subr.mxu0 0.0
  %1538 = vmatpush1.msra.mxu0 0.0
  %1539 = vmatprep.subr.mxu0 0.0
  %1540 = vmatpush1.msra.mxu0 0.0
  %1541 = vmatprep.subr.mxu0 0.0
  %1542 = vmatpush1.msra.mxu0 0.0
  %1543 = vmatprep.subr.mxu0 0.0
  %1544 = vmatpush1.msra.mxu0 0.0
  %1545 = vmatprep.subr.mxu0 0.0
  %1546 = vmatpush1.msra.mxu0 0.0
  %1547 = vmatprep.subr.mxu0 0.0
  %1548 = vmatpush1.msra.mxu0 0.0
  %1549 = vmatprep.subr.mxu0 0.0
  %1550 = vmatpush1.msra.mxu0 0.0
  %1551 = vmatprep.subr.mxu0 0.0
  %1552 = vmatpush1.msra.mxu0 0.0
  %1553 = vmatprep.subr.mxu0 0.0
  %1554 = vmatpush1.msra.mxu0 0.0
  %1555 = vmatprep.mubr.f32.mxu0 0.0
  %1556 = vmatmul.mubr.f32.gmra.mrb[0].mxu0 %v1468
  %v1557 = vpop.f32.mrb[0].mxu0
  %v1558 = vadd.f32 %v1465, %v1557
  %v1559 = vpop.f32.mrb[0].mxu0
  %1560 = vmatprep.mubr.f32.mxu0 0.0
  %1561 = vmatmul.mubr.f32.gmra.mrb[0].mxu0 %v1471
  %v1562 = vpop.f32.mrb[0].mxu0
  %v1563 = vadd.f32 %v1465, %v1562
  %v1564 = vpop.f32.mrb[0].mxu0
  %1565 = vmatprep.mubr.f32.mxu0 0.0
  %1566 = vmatmul.mubr.f32.gmra.mrb[0].mxu0 %v1474
  %v1567 = vpop.f32.mrb[0].mxu0
  %v1568 = vadd.f32 %v1465, %v1567
  %v1569 = vpop.f32.mrb[0].mxu0
  %1570 = vmatprep.mubr.f32.mxu0 0.0
  %1571 = vmatmul.mubr.f32.gmra.mrb[0].mxu0 %v1477
  %v1572 = vpop.f32.mrb[0].mxu0
  %v1573 = vadd.f32 %v1465, %v1572
  %v1574 = vpop.f32.mrb[0].mxu0
  %1575 = vmatprep.mubr.f32.mxu0 0.0
  %1576 = vmatmul.mubr.f32.gmra.mrb[0].mxu0 %v1480
  %v1577 = vpop.f32.mrb[0].mxu0
  %v1578 = vadd.f32 %v1465, %v1577
  %v1579 = vpop.f32.mrb[0].mxu0
  %1580 = vmatprep.mubr.f32.mxu0 0.0
  %1581 = vmatmul.mubr.f32.gmra.mrb[0].mxu0 %v1483
  %v1582 = vpop.f32.mrb[0].mxu0
  %v1583 = vadd.f32 %v1465, %v1582
  %v1584 = vpop.f32.mrb[0].mxu0
  %1585 = vmatprep.mubr.f32.mxu0 0.0
  %1586 = vmatmul.mubr.f32.gmra.mrb[0].mxu0 %v1486
  %v1587 = vpop.f32.mrb[0].mxu0
  %v1588 = vadd.f32 %v1465, %v1587
  %v1589 = vpop.f32.mrb[0].mxu0
  %1590 = vmatprep.mubr.f32.mxu0 0.0
  %1591 = vmatmul.mubr.f32.gmra.mrb[0].mxu0 %v1489
  %v1592 = vpop.f32.mrb[0].mxu0
  %v1593 = vadd.f32 %v1465, %v1592
  %v1594 = vpop.f32.mrb[0].mxu0
  %1595 = vdwg.mxu0
  %1596 = vst.msk [vmem:[%s15] sm:$0xff] %vm68, %v1558
  %1597 = vst.msk [vmem:[%s15 + $0x8] sm:$0xff] %vm68, %v1563
  %1598 = vst.msk [vmem:[%s15 + $0x10] sm:$0xff] %vm68, %v1568
  %1599 = vst.msk [vmem:[%s15 + $0x18] sm:$0xff] %vm68, %v1573
  %1600 = vst.msk [vmem:[%s15 + $0x20] sm:$0xff] %vm68, %v1578
  %1601 = vst.msk [vmem:[%s15 + $0x28] sm:$0xff] %vm68, %v1583
  %1602 = vst.msk [vmem:[%s15 + $0x30] sm:$0xff] %vm68, %v1588
  %1603 = vst.msk [vmem:[%s15 + $0x38] sm:$0xff] %vm68, %v1593
  // Predicated region
  $region68: #{tpu_custom_call.1} parent=0 // pred_check
    _
  $region69: #{tpu_custom_call.1} parent=0 // pred_check_branch
    %1605 = sbr.rel (0) target = $region71
  $region70: #{tpu_custom_call.1} parent=0 // pred_region
    _
  $region71: #{tpu_custom_call.1} parent=0 // pred_fallthru
    _
  // Predicated region
  $region72: #{tpu_custom_call.1} parent=0 // pred_check
    _
  $region73: #{tpu_custom_call.1} parent=0 // pred_check_branch
    %1607 = sbr.rel (0) target = $region75
  $region74: #{tpu_custom_call.1} parent=0 // pred_region
    _
  $region75: #{tpu_custom_call.1} parent=0 // pred_fallthru
    _

</llo_original>
